<compile_context>
chip_gen: v5e
topology: v5e:2x2
jax: 0.10.0
libtpu: 0.0.40
codegen_flags: <defaults>
</compile_context>

<pallas_src>
import numpy as np
import jax
import jax.numpy as jnp
from jax.experimental import pallas as pl
from jax.experimental.pallas import tpu as pltpu


# ---------------------------------------------------------------------------
# Fused kernel: one invocation = QKV projection -> all-head attention ->
# output projection (reduction over heads done in-register).
# ---------------------------------------------------------------------------

def _make_kernel(n_head, B, n, d_k, d_v, d_o, compute_dtype):
    H = n_head
    M = B * n
    f32 = jnp.float32

    def kernel(x_ref, wq_ref, wk_ref, wv_ref, bq_ref, bk_ref, bv_ref,
               wo_ref, bo_ref, attn_ref, out_ref):
        x = x_ref[...].astype(compute_dtype)              # (M, d_x), resident in VMEM
        acc = jnp.zeros((M, d_o), f32)                    # output-projection accumulator

        # Unrolled head loop (H is small and static).  Per-head weights are
        # indexed on the LEADING axis -> no lane-unaligned slicing, no transposes;
        # all reshapes below only split/merge leading dims (free).
        for h in range(H):
            # Fused (x@wq)@fc_q.T etc. : folded at prep time; 1/sqrt(d_k) folded
            # into the q weight/bias columns.
            q = jnp.dot(x, wq_ref[h].astype(compute_dtype),
                        preferred_element_type=f32) + bq_ref[h]      # (M, d_k) f32
            k = jnp.dot(x, wk_ref[h].astype(compute_dtype),
                        preferred_element_type=f32) + bk_ref[h]      # (M, d_k) f32
            v = jnp.dot(x, wv_ref[h].astype(compute_dtype),
                        preferred_element_type=f32) + bv_ref[h]      # (M, d_v) f32

            q3 = q.reshape(B, n, d_k)
            k3 = k.reshape(B, n, d_k)
            v3 = v.reshape(B, n, d_v)

            # Scaled dot-product attention (scale pre-folded).  Scores / softmax
            # statistics stay f32; only MXU operands are cast to compute_dtype.
            s = jnp.einsum('bqd,bkd->bqk',
                           q3.astype(compute_dtype), k3.astype(compute_dtype),
                           preferred_element_type=f32)               # (B, n, n) f32
            m = jnp.max(s, axis=-1, keepdims=True)
            e = jnp.exp(s - m)
            # EUP vrcp: its own VLIW slot, effectively free next to the VALU work.
            inv = pl.reciprocal(jnp.sum(e, axis=-1, keepdims=True), approx=True)
            attn = e * inv                                           # (B, n, n) f32
            attn_ref[h] = attn.astype(attn_ref.dtype)                # head-major store

            ctx = jnp.einsum('bqk,bkd->bqd',
                             attn.astype(compute_dtype), v3.astype(compute_dtype),
                             preferred_element_type=f32)             # (B, n, d_v)

            # Per-head slice of fc_o; reduction over heads stays in registers.
            acc = acc + jnp.dot(ctx.reshape(M, d_v).astype(compute_dtype),
                                wo_ref[h].astype(compute_dtype),
                                preferred_element_type=f32)          # (M, d_o)

        out_ref[...] = (acc + bo_ref[...]).reshape(B, n, d_o).astype(out_ref.dtype)

    return kernel


def self_attention_forward(prep, x, n_head, d_k, d_v, d_o,
                           compute_dtype=jnp.bfloat16):
    """prep: dict of pre-folded weights (see prepare_params). x: (B, n, d_x)."""
    B, n, d_x = x.shape
    H = n_head
    M = B * n

    kernel = _make_kernel(H, B, n, d_k, d_v, d_o, compute_dtype)
    vmem = pl.BlockSpec(memory_space=pltpu.MemorySpace.VMEM)   # whole array, resident

    # Single invocation (grid=()) — every operand is tiny relative to VMEM, so
    # one resident block per operand and zero grid-step / DMA-descriptor overhead.
    attn4, out = pl.pallas_call(
        kernel,
        out_shape=(
            jax.ShapeDtypeStruct((H, B, n, n), jnp.float32),   # attn (head-major)
            jax.ShapeDtypeStruct((B, n, d_o), jnp.float32),    # output
        ),
        in_specs=[vmem] * 9,
        out_specs=(vmem, vmem),
    )(x.reshape(M, d_x).astype(jnp.float32),
      prep["w_q"], prep["w_k"], prep["w_v"],
      prep["b_q"], prep["b_k"], prep["b_v"],
      prep["w_o"], prep["b_o"])

    # Free leading-dim merge to the reference layout (H*B, n, n).
    return attn4.reshape(H * B, n, n), out


# ---------------------------------------------------------------------------
# Parameters: raw (PyTorch-layout) init + one-time fold into effective weights
# ---------------------------------------------------------------------------

def _uniform_param(key, shape):
    stdv = 1.0 / np.power(shape[-1], 0.5)
    return jax.random.uniform(key, shape, minval=-stdv, maxval=stdv,
                              dtype=jnp.float32)


def init_self_attention_params(key, n_head, d_k, d_v, d_x, d_o):
    keys = jax.random.split(key, 11)
    p = {}
    p["wq"] = _uniform_param(keys[0], (d_x, d_k))
    p["wk"] = _uniform_param(keys[1], (d_x, d_k))
    p["wv"] = _uniform_param(keys[2], (d_x, d_v))
    # MHA internal Linear layers (PyTorch Linear: weight (out, in), bias (out,))
    p["fcq_w"] = _uniform_param(keys[3], (n_head * d_k, d_k))
    p["fcq_b"] = _uniform_param(keys[4], (n_head * d_k,))
    p["fck_w"] = _uniform_param(keys[5], (n_head * d_k, d_k))
    p["fck_b"] = _uniform_param(keys[6], (n_head * d_k,))
    p["fcv_w"] = _uniform_param(keys[7], (n_head * d_v, d_v))
    p["fcv_b"] = _uniform_param(keys[8], (n_head * d_v,))
    p["fco_w"] = _uniform_param(keys[9], (d_o, n_head * d_v))
    p["fco_b"] = _uniform_param(keys[10], (d_o,))
    return p


def prepare_params(params, n_head, d_k, d_v, d_x, d_o):
    """One-time fold: (x@w)@fc.T == x@(w@fc.T); 1/sqrt(d_k) into the q path;
    head axis moved to the leading dim so the kernel never slices lanes."""
    H = n_head
    scale = np.float32(np.power(d_k, 0.5))

    def _per_head(w, fc_w, d):
        eff = w @ fc_w.T                                        # (d_x, H*d), head-major cols
        return jnp.transpose(eff.reshape(d_x, H, d), (1, 0, 2)) # (H, d_x, d)

    w_q = _per_head(params["wq"], params["fcq_w"], d_k) / scale
    w_k = _per_head(params["wk"], params["fck_w"], d_k)
    w_v = _per_head(params["wv"], params["fcv_w"], d_v)
    b_q = (params["fcq_b"] / scale).reshape(H, 1, d_k)
    b_k = params["fck_b"].reshape(H, 1, d_k)
    b_v = params["fcv_b"].reshape(H, 1, d_v)
    w_o = params["fco_w"].T.reshape(H, d_v, d_o)                # per-head slice of fc_o
    b_o = params["fco_b"].reshape(1, d_o)

    return {"w_q": w_q.astype(jnp.float32), "w_k": w_k.astype(jnp.float32),
            "w_v": w_v.astype(jnp.float32),
            "b_q": b_q.astype(jnp.float32), "b_k": b_k.astype(jnp.float32),
            "b_v": b_v.astype(jnp.float32),
            "w_o": w_o.astype(jnp.float32), "b_o": b_o.astype(jnp.float32)}


# ---------------------------------------------------------------------------
# Pure-JAX reference mirroring the PyTorch module (for correctness check)
# ---------------------------------------------------------------------------

def reference_forward(params, x, n_head, d_k, d_v, d_o):
    B, n, d_x = x.shape
    H = n_head
    q = x @ params["wq"] @ params["fcq_w"].T + params["fcq_b"]
    k = x @ params["wk"] @ params["fck_w"].T + params["fck_b"]
    v = x @ params["wv"] @ params["fcv_w"].T + params["fcv_b"]
    q = q.reshape(B, n, H, d_k).transpose(2, 0, 1, 3).reshape(H * B, n, d_k)
    k = k.reshape(B, n, H, d_k).transpose(2, 0, 1, 3).reshape(H * B, n, d_k)
    v = v.reshape(B, n, H, d_v).transpose(2, 0, 1, 3).reshape(H * B, n, d_v)
    s = jnp.einsum('hqd,hkd->hqk', q, k) / np.power(d_k, 0.5)
    attn = jax.nn.softmax(s, axis=-1)
    out = jnp.einsum('hqk,hkd->hqd', attn, v)
    out = out.reshape(H, B, n, d_v).transpose(1, 2, 0, 3).reshape(B, n, H * d_v)
    out = out @ params["fco_w"].T + params["fco_b"]
    return attn, out


# ---------------------------------------------------------------------------

if __name__ == "__main__":
    n_head, d_k, d_v, d_x, d_o = 4, 16, 16, 32, 32
    batch, seq = 2, 8

    key = jax.random.PRNGKey(0)
    pkey, xkey = jax.random.split(key)
    params = init_self_attention_params(pkey, n_head, d_k, d_v, d_x, d_o)
    prep = prepare_params(params, n_head, d_k, d_v, d_x, d_o)
    x = jax.random.normal(xkey, (batch, seq, d_x), dtype=jnp.float32)

    attn_ref, out_ref = reference_forward(params, x, n_head, d_k, d_v, d_o)

    # f32 compute path: near-exact match with the PyTorch-equivalent reference.
    attn32, out32 = self_attention_forward(prep, x, n_head, d_k, d_v, d_o,
                                           compute_dtype=jnp.float32)
    attn32 = jax.block_until_ready(attn32)
    out32 = jax.block_until_ready(out32)
    assert attn32.shape == (n_head * batch, seq, seq)
    assert out32.shape == (batch, seq, d_o)
    assert bool(jnp.all(jnp.isfinite(attn32))) and bool(jnp.all(jnp.isfinite(out32)))
    np.testing.assert_allclose(np.asarray(attn32), np.asarray(attn_ref),
                               rtol=2e-3, atol=2e-3)
    np.testing.assert_allclose(np.asarray(out32), np.asarray(out_ref),
                               rtol=2e-3, atol=2e-3)

    # Default bf16 MXU-operand path (softmax statistics stay f32); expected small
    # divergence from the f32 reference, checked at a looser tolerance.
    attn_bf, out_bf = self_attention_forward(prep, x, n_head, d_k, d_v, d_o)
    attn_bf = jax.block_until_ready(attn_bf)
    out_bf = jax.block_until_ready(out_bf)
    np.testing.assert_allclose(np.asarray(attn_bf), np.asarray(attn_ref),
                               rtol=5e-2, atol=2e-2)
    np.testing.assert_allclose(np.asarray(out_bf), np.asarray(out_ref),
                               rtol=5e-2, atol=2e-2)

    print("KERNEL_OK")
</pallas_src>

<mosaic_0001>
module attributes {stable_mosaic.version = 11 : i64} {
  func.func @kernel(%arg0: memref<16x32xf32, #tpu.memory_space<vmem>>, %arg1: memref<4x32x16xf32, #tpu.memory_space<vmem>>, %arg2: memref<4x32x16xf32, #tpu.memory_space<vmem>>, %arg3: memref<4x32x16xf32, #tpu.memory_space<vmem>>, %arg4: memref<4x1x16xf32, #tpu.memory_space<vmem>>, %arg5: memref<4x1x16xf32, #tpu.memory_space<vmem>>, %arg6: memref<4x1x16xf32, #tpu.memory_space<vmem>>, %arg7: memref<4x16x32xf32, #tpu.memory_space<vmem>>, %arg8: memref<1x32xf32, #tpu.memory_space<vmem>>, %arg9: memref<4x2x8x8xf32, #tpu.memory_space<vmem>>, %arg10: memref<2x8x32xf32, #tpu.memory_space<vmem>>) attributes {dimension_semantics = [], scalar_prefetch = 0 : i64, scratch_operands = 0 : i64, tpu.core_type = #tpu.core_type<tc>} {
    %c0 = arith.constant 0 : index
    %c0_0 = arith.constant 0 : index
    %0 = vector.load %arg0[%c0, %c0_0] : memref<16x32xf32, #tpu.memory_space<vmem>>, vector<16x32xf32>
    %cst = arith.constant 0.000000e+00 : f32
    %1 = vector.broadcast %cst : f32 to vector<16x32xf32>
    %c0_1 = arith.constant 0 : index
    %c0_2 = arith.constant 0 : index
    %c0_3 = arith.constant 0 : index
    %2 = vector.load %arg1[%c0_1, %c0_2, %c0_3] : memref<4x32x16xf32, #tpu.memory_space<vmem>>, vector<1x32x16xf32>
    %3 = vector.shape_cast %2 : vector<1x32x16xf32> to vector<32x16xf32>
    %cst_4 = arith.constant dense<0.000000e+00> : vector<16x16xf32>
    %4 = tpu.matmul %0, %3, %cst_4 {dimension_numbers = #tpu.dot_dimension_numbers<[1], [0], [0], [1], [0, 0, 1, 1], [], []>} : vector<16x32xf32>, vector<32x16xf32>, vector<16x16xf32> -> vector<16x16xf32>
    %c0_5 = arith.constant 0 : index
    %c0_6 = arith.constant 0 : index
    %c0_7 = arith.constant 0 : index
    %5 = vector.load %arg4[%c0_5, %c0_6, %c0_7] : memref<4x1x16xf32, #tpu.memory_space<vmem>>, vector<1x1x16xf32>
    %6 = vector.shape_cast %5 : vector<1x1x16xf32> to vector<1x16xf32>
    %7 = vector.broadcast %6 : vector<1x16xf32> to vector<16x16xf32>
    %8 = arith.addf %4, %7 : vector<16x16xf32>
    %c0_8 = arith.constant 0 : index
    %c0_9 = arith.constant 0 : index
    %c0_10 = arith.constant 0 : index
    %9 = vector.load %arg2[%c0_8, %c0_9, %c0_10] : memref<4x32x16xf32, #tpu.memory_space<vmem>>, vector<1x32x16xf32>
    %10 = vector.shape_cast %9 : vector<1x32x16xf32> to vector<32x16xf32>
    %cst_11 = arith.constant dense<0.000000e+00> : vector<16x16xf32>
    %11 = tpu.matmul %0, %10, %cst_11 {dimension_numbers = #tpu.dot_dimension_numbers<[1], [0], [0], [1], [0, 0, 1, 1], [], []>} : vector<16x32xf32>, vector<32x16xf32>, vector<16x16xf32> -> vector<16x16xf32>
    %c0_12 = arith.constant 0 : index
    %c0_13 = arith.constant 0 : index
    %c0_14 = arith.constant 0 : index
    %12 = vector.load %arg5[%c0_12, %c0_13, %c0_14] : memref<4x1x16xf32, #tpu.memory_space<vmem>>, vector<1x1x16xf32>
    %13 = vector.shape_cast %12 : vector<1x1x16xf32> to vector<1x16xf32>
    %14 = vector.broadcast %13 : vector<1x16xf32> to vector<16x16xf32>
    %15 = arith.addf %11, %14 : vector<16x16xf32>
    %c0_15 = arith.constant 0 : index
    %c0_16 = arith.constant 0 : index
    %c0_17 = arith.constant 0 : index
    %16 = vector.load %arg3[%c0_15, %c0_16, %c0_17] : memref<4x32x16xf32, #tpu.memory_space<vmem>>, vector<1x32x16xf32>
    %17 = vector.shape_cast %16 : vector<1x32x16xf32> to vector<32x16xf32>
    %cst_18 = arith.constant dense<0.000000e+00> : vector<16x16xf32>
    %18 = tpu.matmul %0, %17, %cst_18 {dimension_numbers = #tpu.dot_dimension_numbers<[1], [0], [0], [1], [0, 0, 1, 1], [], []>} : vector<16x32xf32>, vector<32x16xf32>, vector<16x16xf32> -> vector<16x16xf32>
    %c0_19 = arith.constant 0 : index
    %c0_20 = arith.constant 0 : index
    %c0_21 = arith.constant 0 : index
    %19 = vector.load %arg6[%c0_19, %c0_20, %c0_21] : memref<4x1x16xf32, #tpu.memory_space<vmem>>, vector<1x1x16xf32>
    %20 = vector.shape_cast %19 : vector<1x1x16xf32> to vector<1x16xf32>
    %21 = vector.broadcast %20 : vector<1x16xf32> to vector<16x16xf32>
    %22 = arith.addf %18, %21 : vector<16x16xf32>
    %23 = vector.shape_cast %8 : vector<16x16xf32> to vector<2x8x16xf32>
    %24 = vector.shape_cast %15 : vector<16x16xf32> to vector<2x8x16xf32>
    %25 = vector.shape_cast %22 : vector<16x16xf32> to vector<2x8x16xf32>
    "tpu.trace_start"() <{level = 10 : i32, message = "bqd,bkd->bqk"}> : () -> ()
    %cst_22 = arith.constant dense<0.000000e+00> : vector<2x8x8xf32>
    %26 = tpu.matmul %23, %24, %cst_22 {dimension_numbers = #tpu.dot_dimension_numbers<[2], [2], [1], [1], [0, 0, 0, 1, 1, 1], [0], [0]>} : vector<2x8x16xf32>, vector<2x8x16xf32>, vector<2x8x8xf32> -> vector<2x8x8xf32>
    "tpu.trace_stop"() : () -> ()
    %cst_23 = arith.constant dense<0xFF800000> : vector<2x8xf32>
    %27 = vector.multi_reduction <maximumf>, %26, %cst_23 [2] : vector<2x8x8xf32> to vector<2x8xf32>
    %28 = vector.shape_cast %27 : vector<2x8xf32> to vector<2x8x1xf32>
    %29 = vector.broadcast %28 : vector<2x8x1xf32> to vector<2x8x8xf32>
    %30 = arith.subf %26, %29 : vector<2x8x8xf32>
    %31 = math.exp %30 : vector<2x8x8xf32>
    %cst_24 = arith.constant dense<0.000000e+00> : vector<2x8xf32>
    %32 = vector.multi_reduction <add>, %31, %cst_24 [2] : vector<2x8x8xf32> to vector<2x8xf32>
    %33 = vector.shape_cast %32 : vector<2x8xf32> to vector<2x8x1xf32>
    %34 = tpu.reciprocal %33 {approx = true} : vector<2x8x1xf32> -> vector<2x8x1xf32>
    %35 = vector.broadcast %34 : vector<2x8x1xf32> to vector<2x8x8xf32>
    %36 = arith.mulf %31, %35 : vector<2x8x8xf32>
    %c0_25 = arith.constant 0 : index
    %c0_26 = arith.constant 0 : index
    %c0_27 = arith.constant 0 : index
    %c0_28 = arith.constant 0 : index
    %37 = vector.load %arg9[%c0_25, %c0_26, %c0_27, %c0_28] : memref<4x2x8x8xf32, #tpu.memory_space<vmem>>, vector<1x2x8x8xf32>
    %38 = vector.shape_cast %37 : vector<1x2x8x8xf32> to vector<2x8x8xf32>
    %39 = vector.shape_cast %36 : vector<2x8x8xf32> to vector<1x2x8x8xf32>
    tpu.vector_store %arg9[%c0_25, %c0_26, %c0_27, %c0_28], %39 {strides = array<i32>} : memref<4x2x8x8xf32, #tpu.memory_space<vmem>>, vector<1x2x8x8xf32>,
    "tpu.trace_start"() <{level = 10 : i32, message = "bqk,bkd->bqd"}> : () -> ()
    %cst_29 = arith.constant dense<0.000000e+00> : vector<2x8x16xf32>
    %40 = tpu.matmul %36, %25, %cst_29 {dimension_numbers = #tpu.dot_dimension_numbers<[2], [1], [1], [2], [0, 0, 0, 1, 1, 2], [0], [0]>} : vector<2x8x8xf32>, vector<2x8x16xf32>, vector<2x8x16xf32> -> vector<2x8x16xf32>
    "tpu.trace_stop"() : () -> ()
    %41 = vector.shape_cast %40 : vector<2x8x16xf32> to vector<16x16xf32>
    %c0_30 = arith.constant 0 : index
    %c0_31 = arith.constant 0 : index
    %c0_32 = arith.constant 0 : index
    %42 = vector.load %arg7[%c0_30, %c0_31, %c0_32] : memref<4x16x32xf32, #tpu.memory_space<vmem>>, vector<1x16x32xf32>
    %43 = vector.shape_cast %42 : vector<1x16x32xf32> to vector<16x32xf32>
    %cst_33 = arith.constant dense<0.000000e+00> : vector<16x32xf32>
    %44 = tpu.matmul %41, %43, %cst_33 {dimension_numbers = #tpu.dot_dimension_numbers<[1], [0], [0], [1], [0, 0, 1, 1], [], []>} : vector<16x16xf32>, vector<16x32xf32>, vector<16x32xf32> -> vector<16x32xf32>
    %45 = arith.addf %1, %44 : vector<16x32xf32>
    %c1 = arith.constant 1 : index
    %c0_34 = arith.constant 0 : index
    %c0_35 = arith.constant 0 : index
    %46 = vector.load %arg1[%c1, %c0_34, %c0_35] : memref<4x32x16xf32, #tpu.memory_space<vmem>>, vector<1x32x16xf32>
    %47 = vector.shape_cast %46 : vector<1x32x16xf32> to vector<32x16xf32>
    %cst_36 = arith.constant dense<0.000000e+00> : vector<16x16xf32>
    %48 = tpu.matmul %0, %47, %cst_36 {dimension_numbers = #tpu.dot_dimension_numbers<[1], [0], [0], [1], [0, 0, 1, 1], [], []>} : vector<16x32xf32>, vector<32x16xf32>, vector<16x16xf32> -> vector<16x16xf32>
    %c1_37 = arith.constant 1 : index
    %c0_38 = arith.constant 0 : index
    %c0_39 = arith.constant 0 : index
    %49 = vector.load %arg4[%c1_37, %c0_38, %c0_39] : memref<4x1x16xf32, #tpu.memory_space<vmem>>, vector<1x1x16xf32>
    %50 = vector.shape_cast %49 : vector<1x1x16xf32> to vector<1x16xf32>
    %51 = vector.broadcast %50 : vector<1x16xf32> to vector<16x16xf32>
    %52 = arith.addf %48, %51 : vector<16x16xf32>
    %c1_40 = arith.constant 1 : index
    %c0_41 = arith.constant 0 : index
    %c0_42 = arith.constant 0 : index
    %53 = vector.load %arg2[%c1_40, %c0_41, %c0_42] : memref<4x32x16xf32, #tpu.memory_space<vmem>>, vector<1x32x16xf32>
    %54 = vector.shape_cast %53 : vector<1x32x16xf32> to vector<32x16xf32>
    %cst_43 = arith.constant dense<0.000000e+00> : vector<16x16xf32>
    %55 = tpu.matmul %0, %54, %cst_43 {dimension_numbers = #tpu.dot_dimension_numbers<[1], [0], [0], [1], [0, 0, 1, 1], [], []>} : vector<16x32xf32>, vector<32x16xf32>, vector<16x16xf32> -> vector<16x16xf32>
    %c1_44 = arith.constant 1 : index
    %c0_45 = arith.constant 0 : index
    %c0_46 = arith.constant 0 : index
    %56 = vector.load %arg5[%c1_44, %c0_45, %c0_46] : memref<4x1x16xf32, #tpu.memory_space<vmem>>, vector<1x1x16xf32>
    %57 = vector.shape_cast %56 : vector<1x1x16xf32> to vector<1x16xf32>
    %58 = vector.broadcast %57 : vector<1x16xf32> to vector<16x16xf32>
    %59 = arith.addf %55, %58 : vector<16x16xf32>
    %c1_47 = arith.constant 1 : index
    %c0_48 = arith.constant 0 : index
    %c0_49 = arith.constant 0 : index
    %60 = vector.load %arg3[%c1_47, %c0_48, %c0_49] : memref<4x32x16xf32, #tpu.memory_space<vmem>>, vector<1x32x16xf32>
    %61 = vector.shape_cast %60 : vector<1x32x16xf32> to vector<32x16xf32>
    %cst_50 = arith.constant dense<0.000000e+00> : vector<16x16xf32>
    %62 = tpu.matmul %0, %61, %cst_50 {dimension_numbers = #tpu.dot_dimension_numbers<[1], [0], [0], [1], [0, 0, 1, 1], [], []>} : vector<16x32xf32>, vector<32x16xf32>, vector<16x16xf32> -> vector<16x16xf32>
    %c1_51 = arith.constant 1 : index
    %c0_52 = arith.constant 0 : index
    %c0_53 = arith.constant 0 : index
    %63 = vector.load %arg6[%c1_51, %c0_52, %c0_53] : memref<4x1x16xf32, #tpu.memory_space<vmem>>, vector<1x1x16xf32>
    %64 = vector.shape_cast %63 : vector<1x1x16xf32> to vector<1x16xf32>
    %65 = vector.broadcast %64 : vector<1x16xf32> to vector<16x16xf32>
    %66 = arith.addf %62, %65 : vector<16x16xf32>
    %67 = vector.shape_cast %52 : vector<16x16xf32> to vector<2x8x16xf32>
    %68 = vector.shape_cast %59 : vector<16x16xf32> to vector<2x8x16xf32>
    %69 = vector.shape_cast %66 : vector<16x16xf32> to vector<2x8x16xf32>
    "tpu.trace_start"() <{level = 10 : i32, message = "bqd,bkd->bqk"}> : () -> ()
    %cst_54 = arith.constant dense<0.000000e+00> : vector<2x8x8xf32>
    %70 = tpu.matmul %67, %68, %cst_54 {dimension_numbers = #tpu.dot_dimension_numbers<[2], [2], [1], [1], [0, 0, 0, 1, 1, 1], [0], [0]>} : vector<2x8x16xf32>, vector<2x8x16xf32>, vector<2x8x8xf32> -> vector<2x8x8xf32>
    "tpu.trace_stop"() : () -> ()
    %cst_55 = arith.constant dense<0xFF800000> : vector<2x8xf32>
    %71 = vector.multi_reduction <maximumf>, %70, %cst_55 [2] : vector<2x8x8xf32> to vector<2x8xf32>
    %72 = vector.shape_cast %71 : vector<2x8xf32> to vector<2x8x1xf32>
    %73 = vector.broadcast %72 : vector<2x8x1xf32> to vector<2x8x8xf32>
    %74 = arith.subf %70, %73 : vector<2x8x8xf32>
    %75 = math.exp %74 : vector<2x8x8xf32>
    %cst_56 = arith.constant dense<0.000000e+00> : vector<2x8xf32>
    %76 = vector.multi_reduction <add>, %75, %cst_56 [2] : vector<2x8x8xf32> to vector<2x8xf32>
    %77 = vector.shape_cast %76 : vector<2x8xf32> to vector<2x8x1xf32>
    %78 = tpu.reciprocal %77 {approx = true} : vector<2x8x1xf32> -> vector<2x8x1xf32>
    %79 = vector.broadcast %78 : vector<2x8x1xf32> to vector<2x8x8xf32>
    %80 = arith.mulf %75, %79 : vector<2x8x8xf32>
    %c1_57 = arith.constant 1 : index
    %c0_58 = arith.constant 0 : index
    %c0_59 = arith.constant 0 : index
    %c0_60 = arith.constant 0 : index
    %81 = vector.load %arg9[%c1_57, %c0_58, %c0_59, %c0_60] : memref<4x2x8x8xf32, #tpu.memory_space<vmem>>, vector<1x2x8x8xf32>
    %82 = vector.shape_cast %81 : vector<1x2x8x8xf32> to vector<2x8x8xf32>
    %83 = vector.shape_cast %80 : vector<2x8x8xf32> to vector<1x2x8x8xf32>
    tpu.vector_store %arg9[%c1_57, %c0_58, %c0_59, %c0_60], %83 {strides = array<i32>} : memref<4x2x8x8xf32, #tpu.memory_space<vmem>>, vector<1x2x8x8xf32>,
    "tpu.trace_start"() <{level = 10 : i32, message = "bqk,bkd->bqd"}> : () -> ()
    %cst_61 = arith.constant dense<0.000000e+00> : vector<2x8x16xf32>
    %84 = tpu.matmul %80, %69, %cst_61 {dimension_numbers = #tpu.dot_dimension_numbers<[2], [1], [1], [2], [0, 0, 0, 1, 1, 2], [0], [0]>} : vector<2x8x8xf32>, vector<2x8x16xf32>, vector<2x8x16xf32> -> vector<2x8x16xf32>
    "tpu.trace_stop"() : () -> ()
    %85 = vector.shape_cast %84 : vector<2x8x16xf32> to vector<16x16xf32>
    %c1_62 = arith.constant 1 : index
    %c0_63 = arith.constant 0 : index
    %c0_64 = arith.constant 0 : index
    %86 = vector.load %arg7[%c1_62, %c0_63, %c0_64] : memref<4x16x32xf32, #tpu.memory_space<vmem>>, vector<1x16x32xf32>
    %87 = vector.shape_cast %86 : vector<1x16x32xf32> to vector<16x32xf32>
    %cst_65 = arith.constant dense<0.000000e+00> : vector<16x32xf32>
    %88 = tpu.matmul %85, %87, %cst_65 {dimension_numbers = #tpu.dot_dimension_numbers<[1], [0], [0], [1], [0, 0, 1, 1], [], []>} : vector<16x16xf32>, vector<16x32xf32>, vector<16x32xf32> -> vector<16x32xf32>
    %89 = arith.addf %45, %88 : vector<16x32xf32>
    %c2 = arith.constant 2 : index
    %c0_66 = arith.constant 0 : index
    %c0_67 = arith.constant 0 : index
    %90 = vector.load %arg1[%c2, %c0_66, %c0_67] : memref<4x32x16xf32, #tpu.memory_space<vmem>>, vector<1x32x16xf32>
    %91 = vector.shape_cast %90 : vector<1x32x16xf32> to vector<32x16xf32>
    %cst_68 = arith.constant dense<0.000000e+00> : vector<16x16xf32>
    %92 = tpu.matmul %0, %91, %cst_68 {dimension_numbers = #tpu.dot_dimension_numbers<[1], [0], [0], [1], [0, 0, 1, 1], [], []>} : vector<16x32xf32>, vector<32x16xf32>, vector<16x16xf32> -> vector<16x16xf32>
    %c2_69 = arith.constant 2 : index
    %c0_70 = arith.constant 0 : index
    %c0_71 = arith.constant 0 : index
    %93 = vector.load %arg4[%c2_69, %c0_70, %c0_71] : memref<4x1x16xf32, #tpu.memory_space<vmem>>, vector<1x1x16xf32>
    %94 = vector.shape_cast %93 : vector<1x1x16xf32> to vector<1x16xf32>
    %95 = vector.broadcast %94 : vector<1x16xf32> to vector<16x16xf32>
    %96 = arith.addf %92, %95 : vector<16x16xf32>
    %c2_72 = arith.constant 2 : index
    %c0_73 = arith.constant 0 : index
    %c0_74 = arith.constant 0 : index
    %97 = vector.load %arg2[%c2_72, %c0_73, %c0_74] : memref<4x32x16xf32, #tpu.memory_space<vmem>>, vector<1x32x16xf32>
    %98 = vector.shape_cast %97 : vector<1x32x16xf32> to vector<32x16xf32>
    %cst_75 = arith.constant dense<0.000000e+00> : vector<16x16xf32>
    %99 = tpu.matmul %0, %98, %cst_75 {dimension_numbers = #tpu.dot_dimension_numbers<[1], [0], [0], [1], [0, 0, 1, 1], [], []>} : vector<16x32xf32>, vector<32x16xf32>, vector<16x16xf32> -> vector<16x16xf32>
    %c2_76 = arith.constant 2 : index
    %c0_77 = arith.constant 0 : index
    %c0_78 = arith.constant 0 : index
    %100 = vector.load %arg5[%c2_76, %c0_77, %c0_78] : memref<4x1x16xf32, #tpu.memory_space<vmem>>, vector<1x1x16xf32>
    %101 = vector.shape_cast %100 : vector<1x1x16xf32> to vector<1x16xf32>
    %102 = vector.broadcast %101 : vector<1x16xf32> to vector<16x16xf32>
    %103 = arith.addf %99, %102 : vector<16x16xf32>
    %c2_79 = arith.constant 2 : index
    %c0_80 = arith.constant 0 : index
    %c0_81 = arith.constant 0 : index
    %104 = vector.load %arg3[%c2_79, %c0_80, %c0_81] : memref<4x32x16xf32, #tpu.memory_space<vmem>>, vector<1x32x16xf32>
    %105 = vector.shape_cast %104 : vector<1x32x16xf32> to vector<32x16xf32>
    %cst_82 = arith.constant dense<0.000000e+00> : vector<16x16xf32>
    %106 = tpu.matmul %0, %105, %cst_82 {dimension_numbers = #tpu.dot_dimension_numbers<[1], [0], [0], [1], [0, 0, 1, 1], [], []>} : vector<16x32xf32>, vector<32x16xf32>, vector<16x16xf32> -> vector<16x16xf32>
    %c2_83 = arith.constant 2 : index
    %c0_84 = arith.constant 0 : index
    %c0_85 = arith.constant 0 : index
    %107 = vector.load %arg6[%c2_83, %c0_84, %c0_85] : memref<4x1x16xf32, #tpu.memory_space<vmem>>, vector<1x1x16xf32>
    %108 = vector.shape_cast %107 : vector<1x1x16xf32> to vector<1x16xf32>
    %109 = vector.broadcast %108 : vector<1x16xf32> to vector<16x16xf32>
    %110 = arith.addf %106, %109 : vector<16x16xf32>
    %111 = vector.shape_cast %96 : vector<16x16xf32> to vector<2x8x16xf32>
    %112 = vector.shape_cast %103 : vector<16x16xf32> to vector<2x8x16xf32>
    %113 = vector.shape_cast %110 : vector<16x16xf32> to vector<2x8x16xf32>
    "tpu.trace_start"() <{level = 10 : i32, message = "bqd,bkd->bqk"}> : () -> ()
    %cst_86 = arith.constant dense<0.000000e+00> : vector<2x8x8xf32>
    %114 = tpu.matmul %111, %112, %cst_86 {dimension_numbers = #tpu.dot_dimension_numbers<[2], [2], [1], [1], [0, 0, 0, 1, 1, 1], [0], [0]>} : vector<2x8x16xf32>, vector<2x8x16xf32>, vector<2x8x8xf32> -> vector<2x8x8xf32>
    "tpu.trace_stop"() : () -> ()
    %cst_87 = arith.constant dense<0xFF800000> : vector<2x8xf32>
    %115 = vector.multi_reduction <maximumf>, %114, %cst_87 [2] : vector<2x8x8xf32> to vector<2x8xf32>
    %116 = vector.shape_cast %115 : vector<2x8xf32> to vector<2x8x1xf32>
    %117 = vector.broadcast %116 : vector<2x8x1xf32> to vector<2x8x8xf32>
    %118 = arith.subf %114, %117 : vector<2x8x8xf32>
    %119 = math.exp %118 : vector<2x8x8xf32>
    %cst_88 = arith.constant dense<0.000000e+00> : vector<2x8xf32>
    %120 = vector.multi_reduction <add>, %119, %cst_88 [2] : vector<2x8x8xf32> to vector<2x8xf32>
    %121 = vector.shape_cast %120 : vector<2x8xf32> to vector<2x8x1xf32>
    %122 = tpu.reciprocal %121 {approx = true} : vector<2x8x1xf32> -> vector<2x8x1xf32>
    %123 = vector.broadcast %122 : vector<2x8x1xf32> to vector<2x8x8xf32>
    %124 = arith.mulf %119, %123 : vector<2x8x8xf32>
    %c2_89 = arith.constant 2 : index
    %c0_90 = arith.constant 0 : index
    %c0_91 = arith.constant 0 : index
    %c0_92 = arith.constant 0 : index
    %125 = vector.load %arg9[%c2_89, %c0_90, %c0_91, %c0_92] : memref<4x2x8x8xf32, #tpu.memory_space<vmem>>, vector<1x2x8x8xf32>
    %126 = vector.shape_cast %125 : vector<1x2x8x8xf32> to vector<2x8x8xf32>
    %127 = vector.shape_cast %124 : vector<2x8x8xf32> to vector<1x2x8x8xf32>
    tpu.vector_store %arg9[%c2_89, %c0_90, %c0_91, %c0_92], %127 {strides = array<i32>} : memref<4x2x8x8xf32, #tpu.memory_space<vmem>>, vector<1x2x8x8xf32>,
    "tpu.trace_start"() <{level = 10 : i32, message = "bqk,bkd->bqd"}> : () -> ()
    %cst_93 = arith.constant dense<0.000000e+00> : vector<2x8x16xf32>
    %128 = tpu.matmul %124, %113, %cst_93 {dimension_numbers = #tpu.dot_dimension_numbers<[2], [1], [1], [2], [0, 0, 0, 1, 1, 2], [0], [0]>} : vector<2x8x8xf32>, vector<2x8x16xf32>, vector<2x8x16xf32> -> vector<2x8x16xf32>
    "tpu.trace_stop"() : () -> ()
    %129 = vector.shape_cast %128 : vector<2x8x16xf32> to vector<16x16xf32>
    %c2_94 = arith.constant 2 : index
    %c0_95 = arith.constant 0 : index
    %c0_96 = arith.constant 0 : index
    %130 = vector.load %arg7[%c2_94, %c0_95, %c0_96] : memref<4x16x32xf32, #tpu.memory_space<vmem>>, vector<1x16x32xf32>
    %131 = vector.shape_cast %130 : vector<1x16x32xf32> to vector<16x32xf32>
    %cst_97 = arith.constant dense<0.000000e+00> : vector<16x32xf32>
    %132 = tpu.matmul %129, %131, %cst_97 {dimension_numbers = #tpu.dot_dimension_numbers<[1], [0], [0], [1], [0, 0, 1, 1], [], []>} : vector<16x16xf32>, vector<16x32xf32>, vector<16x32xf32> -> vector<16x32xf32>
    %133 = arith.addf %89, %132 : vector<16x32xf32>
    %c3 = arith.constant 3 : index
    %c0_98 = arith.constant 0 : index
    %c0_99 = arith.constant 0 : index
    %134 = vector.load %arg1[%c3, %c0_98, %c0_99] : memref<4x32x16xf32, #tpu.memory_space<vmem>>, vector<1x32x16xf32>
    %135 = vector.shape_cast %134 : vector<1x32x16xf32> to vector<32x16xf32>
    %cst_100 = arith.constant dense<0.000000e+00> : vector<16x16xf32>
    %136 = tpu.matmul %0, %135, %cst_100 {dimension_numbers = #tpu.dot_dimension_numbers<[1], [0], [0], [1], [0, 0, 1, 1], [], []>} : vector<16x32xf32>, vector<32x16xf32>, vector<16x16xf32> -> vector<16x16xf32>
    %c3_101 = arith.constant 3 : index
    %c0_102 = arith.constant 0 : index
    %c0_103 = arith.constant 0 : index
    %137 = vector.load %arg4[%c3_101, %c0_102, %c0_103] : memref<4x1x16xf32, #tpu.memory_space<vmem>>, vector<1x1x16xf32>
    %138 = vector.shape_cast %137 : vector<1x1x16xf32> to vector<1x16xf32>
    %139 = vector.broadcast %138 : vector<1x16xf32> to vector<16x16xf32>
    %140 = arith.addf %136, %139 : vector<16x16xf32>
    %c3_104 = arith.constant 3 : index
    %c0_105 = arith.constant 0 : index
    %c0_106 = arith.constant 0 : index
    %141 = vector.load %arg2[%c3_104, %c0_105, %c0_106] : memref<4x32x16xf32, #tpu.memory_space<vmem>>, vector<1x32x16xf32>
    %142 = vector.shape_cast %141 : vector<1x32x16xf32> to vector<32x16xf32>
    %cst_107 = arith.constant dense<0.000000e+00> : vector<16x16xf32>
    %143 = tpu.matmul %0, %142, %cst_107 {dimension_numbers = #tpu.dot_dimension_numbers<[1], [0], [0], [1], [0, 0, 1, 1], [], []>} : vector<16x32xf32>, vector<32x16xf32>, vector<16x16xf32> -> vector<16x16xf32>
    %c3_108 = arith.constant 3 : index
    %c0_109 = arith.constant 0 : index
    %c0_110 = arith.constant 0 : index
    %144 = vector.load %arg5[%c3_108, %c0_109, %c0_110] : memref<4x1x16xf32, #tpu.memory_space<vmem>>, vector<1x1x16xf32>
    %145 = vector.shape_cast %144 : vector<1x1x16xf32> to vector<1x16xf32>
    %146 = vector.broadcast %145 : vector<1x16xf32> to vector<16x16xf32>
    %147 = arith.addf %143, %146 : vector<16x16xf32>
    %c3_111 = arith.constant 3 : index
    %c0_112 = arith.constant 0 : index
    %c0_113 = arith.constant 0 : index
    %148 = vector.load %arg3[%c3_111, %c0_112, %c0_113] : memref<4x32x16xf32, #tpu.memory_space<vmem>>, vector<1x32x16xf32>
    %149 = vector.shape_cast %148 : vector<1x32x16xf32> to vector<32x16xf32>
    %cst_114 = arith.constant dense<0.000000e+00> : vector<16x16xf32>
    %150 = tpu.matmul %0, %149, %cst_114 {dimension_numbers = #tpu.dot_dimension_numbers<[1], [0], [0], [1], [0, 0, 1, 1], [], []>} : vector<16x32xf32>, vector<32x16xf32>, vector<16x16xf32> -> vector<16x16xf32>
    %c3_115 = arith.constant 3 : index
    %c0_116 = arith.constant 0 : index
    %c0_117 = arith.constant 0 : index
    %151 = vector.load %arg6[%c3_115, %c0_116, %c0_117] : memref<4x1x16xf32, #tpu.memory_space<vmem>>, vector<1x1x16xf32>
    %152 = vector.shape_cast %151 : vector<1x1x16xf32> to vector<1x16xf32>
    %153 = vector.broadcast %152 : vector<1x16xf32> to vector<16x16xf32>
    %154 = arith.addf %150, %153 : vector<16x16xf32>
    %155 = vector.shape_cast %140 : vector<16x16xf32> to vector<2x8x16xf32>
    %156 = vector.shape_cast %147 : vector<16x16xf32> to vector<2x8x16xf32>
    %157 = vector.shape_cast %154 : vector<16x16xf32> to vector<2x8x16xf32>
    "tpu.trace_start"() <{level = 10 : i32, message = "bqd,bkd->bqk"}> : () -> ()
    %cst_118 = arith.constant dense<0.000000e+00> : vector<2x8x8xf32>
    %158 = tpu.matmul %155, %156, %cst_118 {dimension_numbers = #tpu.dot_dimension_numbers<[2], [2], [1], [1], [0, 0, 0, 1, 1, 1], [0], [0]>} : vector<2x8x16xf32>, vector<2x8x16xf32>, vector<2x8x8xf32> -> vector<2x8x8xf32>
    "tpu.trace_stop"() : () -> ()
    %cst_119 = arith.constant dense<0xFF800000> : vector<2x8xf32>
    %159 = vector.multi_reduction <maximumf>, %158, %cst_119 [2] : vector<2x8x8xf32> to vector<2x8xf32>
    %160 = vector.shape_cast %159 : vector<2x8xf32> to vector<2x8x1xf32>
    %161 = vector.broadcast %160 : vector<2x8x1xf32> to vector<2x8x8xf32>
    %162 = arith.subf %158, %161 : vector<2x8x8xf32>
    %163 = math.exp %162 : vector<2x8x8xf32>
    %cst_120 = arith.constant dense<0.000000e+00> : vector<2x8xf32>
    %164 = vector.multi_reduction <add>, %163, %cst_120 [2] : vector<2x8x8xf32> to vector<2x8xf32>
    %165 = vector.shape_cast %164 : vector<2x8xf32> to vector<2x8x1xf32>
    %166 = tpu.reciprocal %165 {approx = true} : vector<2x8x1xf32> -> vector<2x8x1xf32>
    %167 = vector.broadcast %166 : vector<2x8x1xf32> to vector<2x8x8xf32>
    %168 = arith.mulf %163, %167 : vector<2x8x8xf32>
    %c3_121 = arith.constant 3 : index
    %c0_122 = arith.constant 0 : index
    %c0_123 = arith.constant 0 : index
    %c0_124 = arith.constant 0 : index
    %169 = vector.load %arg9[%c3_121, %c0_122, %c0_123, %c0_124] : memref<4x2x8x8xf32, #tpu.memory_space<vmem>>, vector<1x2x8x8xf32>
    %170 = vector.shape_cast %169 : vector<1x2x8x8xf32> to vector<2x8x8xf32>
    %171 = vector.shape_cast %168 : vector<2x8x8xf32> to vector<1x2x8x8xf32>
    tpu.vector_store %arg9[%c3_121, %c0_122, %c0_123, %c0_124], %171 {strides = array<i32>} : memref<4x2x8x8xf32, #tpu.memory_space<vmem>>, vector<1x2x8x8xf32>,
    "tpu.trace_start"() <{level = 10 : i32, message = "bqk,bkd->bqd"}> : () -> ()
    %cst_125 = arith.constant dense<0.000000e+00> : vector<2x8x16xf32>
    %172 = tpu.matmul %168, %157, %cst_125 {dimension_numbers = #tpu.dot_dimension_numbers<[2], [1], [1], [2], [0, 0, 0, 1, 1, 2], [0], [0]>} : vector<2x8x8xf32>, vector<2x8x16xf32>, vector<2x8x16xf32> -> vector<2x8x16xf32>
    "tpu.trace_stop"() : () -> ()
    %173 = vector.shape_cast %172 : vector<2x8x16xf32> to vector<16x16xf32>
    %c3_126 = arith.constant 3 : index
    %c0_127 = arith.constant 0 : index
    %c0_128 = arith.constant 0 : index
    %174 = vector.load %arg7[%c3_126, %c0_127, %c0_128] : memref<4x16x32xf32, #tpu.memory_space<vmem>>, vector<1x16x32xf32>
    %175 = vector.shape_cast %174 : vector<1x16x32xf32> to vector<16x32xf32>
    %cst_129 = arith.constant dense<0.000000e+00> : vector<16x32xf32>
    %176 = tpu.matmul %173, %175, %cst_129 {dimension_numbers = #tpu.dot_dimension_numbers<[1], [0], [0], [1], [0, 0, 1, 1], [], []>} : vector<16x16xf32>, vector<16x32xf32>, vector<16x32xf32> -> vector<16x32xf32>
    %177 = arith.addf %133, %176 : vector<16x32xf32>
    %c0_130 = arith.constant 0 : index
    %c0_131 = arith.constant 0 : index
    %178 = vector.load %arg8[%c0_130, %c0_131] : memref<1x32xf32, #tpu.memory_space<vmem>>, vector<1x32xf32>
    %179 = vector.broadcast %178 : vector<1x32xf32> to vector<16x32xf32>
    %180 = arith.addf %177, %179 : vector<16x32xf32>
    %181 = vector.shape_cast %180 : vector<16x32xf32> to vector<2x8x32xf32>
    %c0_132 = arith.constant 0 : index
    %c0_133 = arith.constant 0 : index
    %c0_134 = arith.constant 0 : index
    %182 = vector.load %arg10[%c0_132, %c0_133, %c0_134] : memref<2x8x32xf32, #tpu.memory_space<vmem>>, vector<2x8x32xf32>
    tpu.vector_store %arg10[%c0_132, %c0_133, %c0_134], %181 {strides = array<i32>} : memref<2x8x32xf32, #tpu.memory_space<vmem>>, vector<2x8x32xf32>,
    return
  }
}

</mosaic_0001>

<llo_original>
// kernel: tpu_custom_call.1
$region0: #{tpu_custom_call.1}
  #allocation0 [shape = 'u32[]', space=smem, size = 0x4, offset = 0x4, fixed_abs, tag = 'smem constant byte address 0x4 - core index']
  #allocation1 [shape = 'u32[72,128]{1,0:T(1,128)}', space=vmem, size = 0x9000, scoped, tag = 'internal scratch']
  %s0 = inlined_call_operand.vmem [shape: f32[16,32], index: 0, kind: input, shape index: {}]
  %s1 = inlined_call_operand.vmem [shape: f32[4,32,16], index: 1, kind: input, shape index: {}]
  %s2 = inlined_call_operand.vmem [shape: f32[4,32,16], index: 2, kind: input, shape index: {}]
  %s3 = inlined_call_operand.vmem [shape: f32[4,32,16], index: 3, kind: input, shape index: {}]
  %s4 = inlined_call_operand.vmem [shape: f32[4,1,16], index: 4, kind: input, shape index: {}]
  %s5 = inlined_call_operand.vmem [shape: f32[4,1,16], index: 5, kind: input, shape index: {}]
  %s6 = inlined_call_operand.vmem [shape: f32[4,1,16], index: 6, kind: input, shape index: {}]
  %s7 = inlined_call_operand.vmem [shape: f32[4,16,32], index: 7, kind: input, shape index: {}]
  %s8 = inlined_call_operand.vmem [shape: f32[1,32], index: 8, kind: input, shape index: {}]
  %s9 = inlined_call_operand.hbm [shape: f32[4,2,8,8], index: 9, kind: output, shape index: {0}]
  %s10 = inlined_call_operand.hbm [shape: f32[2,8,32], index: 10, kind: output, shape index: {1}]
  %11 = xla_tuple %s9, %s10
  %s12 = sld [smem:[#allocation0]]
  $region54: #{tpu_custom_call.1} parent=0
    _
  %s14 = ssub.s32 1, %s12
  %s15 = scalar_select 0, %s14, %s12
  $region1: #{tpu_custom_call.1} parent=0
    #allocation2 [shape = 'u8[32768]{0}', space=vmem, size = 0x8000, scoped, tag = 'output window, operand 0, single buffered']
    #allocation3 [shape = 's32[1]{0}', space=sflag, size = 0x4, scoped, tag = 'scoped memory for tpu_custom_call.1']
    #allocation4 [shape = 'u8[8192]{0}', space=vmem, size = 0x2000, scoped, tag = 'output window, operand 1, single buffered']
    #allocation5 [shape = 's32[1]{0}', space=sflag, size = 0x4, scoped, tag = 'scoped memory for tpu_custom_call.1']
    %16 = vsyncpa [#allocation3], 0
    %17 = vsyncpa [#allocation5], 0
    // Predicated region
    $region2: #{tpu_custom_call.1} parent=1 // pred_check
      _
    $region3: #{tpu_custom_call.1} parent=1 // pred_check_branch
      %19 = sbr.rel (0) target = $region5
    $region4: #{tpu_custom_call.1} parent=1 // pred_region
      _
    $region5: #{tpu_custom_call.1} parent=1 // pred_fallthru
      _
    // Predicated region
    $region6: #{tpu_custom_call.1} parent=1 // pred_check
      _
    $region7: #{tpu_custom_call.1} parent=1 // pred_check_branch
      %21 = sbr.rel (0) target = $region9
    $region8: #{tpu_custom_call.1} parent=1 // pred_region
      _
    $region9: #{tpu_custom_call.1} parent=1 // pred_fallthru
      _
    // Predicated region
    $region10: #{tpu_custom_call.1} parent=1 // pred_check
      _
    $region11: #{tpu_custom_call.1} parent=1 // pred_check_branch
      %23 = sbr.rel (0) target = $region13
    $region12: #{tpu_custom_call.1} parent=1 // pred_region
      _
    $region13: #{tpu_custom_call.1} parent=1 // pred_fallthru
      _
    // Predicated region
    $region14: #{tpu_custom_call.1} parent=1 // pred_check
      _
    $region15: #{tpu_custom_call.1} parent=1 // pred_check_branch
      %25 = sbr.rel (0) target = $region17
    $region16: #{tpu_custom_call.1} parent=1 // pred_region
      _
    $region17: #{tpu_custom_call.1} parent=1 // pred_fallthru
      _
    // Predicated region
    $region18: #{tpu_custom_call.1} parent=1 // pred_check
      _
    $region19: #{tpu_custom_call.1} parent=1 // pred_check_branch
      %27 = sbr.rel (0) target = $region21
    $region20: #{tpu_custom_call.1} parent=1 // pred_region
      _
    $region21: #{tpu_custom_call.1} parent=1 // pred_fallthru
      _
    // Predicated region
    $region22: #{tpu_custom_call.1} parent=1 // pred_check
      _
    $region23: #{tpu_custom_call.1} parent=1 // pred_check_branch
      %29 = sbr.rel (0) target = $region25
    $region24: #{tpu_custom_call.1} parent=1 // pred_region
      _
    $region25: #{tpu_custom_call.1} parent=1 // pred_fallthru
      _
    // Predicated region
    $region26: #{tpu_custom_call.1} parent=1 // pred_check
      _
    $region27: #{tpu_custom_call.1} parent=1 // pred_check_branch
      %31 = sbr.rel (0) target = $region29
    $region28: #{tpu_custom_call.1} parent=1 // pred_region
      _
    $region29: #{tpu_custom_call.1} parent=1 // pred_fallthru
      _
    // Predicated region
    $region30: #{tpu_custom_call.1} parent=1 // pred_check
      _
    $region31: #{tpu_custom_call.1} parent=1 // pred_check_branch
      %33 = sbr.rel (0) target = $region33
    $region32: #{tpu_custom_call.1} parent=1 // pred_region
      _
    $region33: #{tpu_custom_call.1} parent=1 // pred_fallthru
      _
    // Predicated region
    $region34: #{tpu_custom_call.1} parent=1 // pred_check
      _
    $region35: #{tpu_custom_call.1} parent=1 // pred_check_branch
      %35 = sbr.rel (0) target = $region37
    $region36: #{tpu_custom_call.1} parent=1 // pred_region
      _
    $region37: #{tpu_custom_call.1} parent=1 // pred_fallthru
      _
    %v36 = vld [vmem:[%s0] sm:$0xff]
    %v37 = vld [vmem:[%s0 + $0x8] sm:$0xff]
    %v38 = vld [vmem:[%s1] sm:$0xff]
    %v39 = vld [vmem:[%s1 + $0x8] sm:$0xff]
    %v40 = vld [vmem:[%s1 + $0x10] sm:$0xff]
    %v41 = vld [vmem:[%s1 + $0x18] sm:$0xff]
    %v42 = vld [vmem:[%s4] sm:$0x1]
    %v44 = vperm.slane %v42, 0
    %vm46 = vcmask 261120
    %v48 = vsel %vm46, %v36, 0
    %v51 = vsel %vm46, %v37, 0
    %53 = vmatpush.msra.mxu0 0.0
    %54 = vmatpush.msra.mxu0 0.0
    %55 = vmatpush.msra.mxu0 0.0
    %56 = vmatpush.msra.mxu0 0.0
    %57 = vmatpush.msra.mxu0 0.0
    %58 = vmatpush.msra.mxu0 0.0
    %59 = vmatpush.msra.mxu0 0.0
    %60 = vmatpush.msra.mxu0 0.0
    %61 = vmatpush.msra.mxu0 0.0
    %62 = vmatpush.msra.mxu0 0.0
    %63 = vmatpush.msra.mxu0 0.0
    %64 = vmatpush.msra.mxu0 0.0
    %65 = vmatpush.msra.mxu0 %v41
    %66 = vmatpush.msra.mxu0 %v40
    %67 = vmatpush.msra.mxu0 %v39
    %68 = vmatpush.msra.mxu0 %v38
    %69 = vmatmul.f32.gmra.mxu0 %v48
    %v70 = vpop.f32.mrf.mxu0
    %v71 = vadd.f32 %v44, %v70
    %72 = vmatmul.f32.gmra.mxu0 %v51
    %v73 = vpop.f32.mrf.mxu0
    %v74 = vadd.f32 %v44, %v73
    %75 = vdwg.mxu0
    %v76 = vld [vmem:[%s2] sm:$0xff]
    %v77 = vld [vmem:[%s2 + $0x8] sm:$0xff]
    %v78 = vld [vmem:[%s2 + $0x10] sm:$0xff]
    %v79 = vld [vmem:[%s2 + $0x18] sm:$0xff]
    %v80 = vld [vmem:[%s5] sm:$0x1]
    %v82 = vperm.slane %v80, 0
    %84 = vmatpush.msra.mxu0 0.0
    %85 = vmatpush.msra.mxu0 0.0
    %86 = vmatpush.msra.mxu0 0.0
    %87 = vmatpush.msra.mxu0 0.0
    %88 = vmatpush.msra.mxu0 0.0
    %89 = vmatpush.msra.mxu0 0.0
    %90 = vmatpush.msra.mxu0 0.0
    %91 = vmatpush.msra.mxu0 0.0
    %92 = vmatpush.msra.mxu0 0.0
    %93 = vmatpush.msra.mxu0 0.0
    %94 = vmatpush.msra.mxu0 0.0
    %95 = vmatpush.msra.mxu0 0.0
    %96 = vmatpush.msra.mxu0 %v79
    %97 = vmatpush.msra.mxu0 %v78
    %98 = vmatpush.msra.mxu0 %v77
    %99 = vmatpush.msra.mxu0 %v76
    %100 = vmatmul.f32.gmra.mxu0 %v48
    %v101 = vpop.f32.mrf.mxu0
    %v102 = vadd.f32 %v82, %v101
    %103 = vmatmul.f32.gmra.mxu0 %v51
    %v104 = vpop.f32.mrf.mxu0
    %v105 = vadd.f32 %v82, %v104
    %106 = vdwg.mxu0
    %v107 = vld [vmem:[%s3] sm:$0xff]
    %v108 = vld [vmem:[%s3 + $0x8] sm:$0xff]
    %v109 = vld [vmem:[%s3 + $0x10] sm:$0xff]
    %v110 = vld [vmem:[%s3 + $0x18] sm:$0xff]
    %v111 = vld [vmem:[%s6] sm:$0x1]
    %v113 = vperm.slane %v111, 0
    %115 = vmatpush.msra.mxu0 0.0
    %116 = vmatpush.msra.mxu0 0.0
    %117 = vmatpush.msra.mxu0 0.0
    %118 = vmatpush.msra.mxu0 0.0
    %119 = vmatpush.msra.mxu0 0.0
    %120 = vmatpush.msra.mxu0 0.0
    %121 = vmatpush.msra.mxu0 0.0
    %122 = vmatpush.msra.mxu0 0.0
    %123 = vmatpush.msra.mxu0 0.0
    %124 = vmatpush.msra.mxu0 0.0
    %125 = vmatpush.msra.mxu0 0.0
    %126 = vmatpush.msra.mxu0 0.0
    %127 = vmatpush.msra.mxu0 %v110
    %128 = vmatpush.msra.mxu0 %v109
    %129 = vmatpush.msra.mxu0 %v108
    %130 = vmatpush.msra.mxu0 %v107
    %131 = vmatmul.f32.gmra.mxu0 %v48
    %v132 = vpop.f32.mrf.mxu0
    %v133 = vadd.f32 %v113, %v132
    %134 = vmatmul.f32.gmra.mxu0 %v51
    %v135 = vpop.f32.mrf.mxu0
    %v136 = vadd.f32 %v113, %v135
    %137 = vdwg.mxu0
    %vm138 = vcmask 130048
    %v140 = vsel %vm138, %v71, 0
    %v143 = vsel %vm138, %v102, 0
    %145 = vmatpush.xpose.msra.mxu0 0.0
    %146 = vmatpush.xpose.msra.mxu0 0.0
    %147 = vmatpush.xpose.msra.mxu0 0.0
    %148 = vmatpush.xpose.msra.mxu0 0.0
    %149 = vmatpush.xpose.msra.mxu0 0.0
    %150 = vmatpush.xpose.msra.mxu0 0.0
    %151 = vmatpush.xpose.msra.mxu0 0.0
    %152 = vmatpush.xpose.msra.mxu0 0.0
    %153 = vmatpush.xpose.msra.mxu0 0.0
    %154 = vmatpush.xpose.msra.mxu0 0.0
    %155 = vmatpush.xpose.msra.mxu0 0.0
    %156 = vmatpush.xpose.msra.mxu0 0.0
    %157 = vmatpush.xpose.msra.mxu0 0.0
    %158 = vmatpush.xpose.msra.mxu0 0.0
    %159 = vmatpush.xpose.msra.mxu0 0.0
    %160 = vmatpush.xpose.msra.mxu0 %v143
    %161 = vmatmul.f32.gmra.mxu0 %v140
    %v162 = vpop.f32.mrf.mxu0
    %v163 = vadd.f32 0.0, %v162
    %164 = vdwg.mxu0
    %v166 = vsel %vm138, %v74, 0
    %v169 = vsel %vm138, %v105, 0
    %171 = vmatpush.xpose.msra.mxu0 0.0
    %172 = vmatpush.xpose.msra.mxu0 0.0
    %173 = vmatpush.xpose.msra.mxu0 0.0
    %174 = vmatpush.xpose.msra.mxu0 0.0
    %175 = vmatpush.xpose.msra.mxu0 0.0
    %176 = vmatpush.xpose.msra.mxu0 0.0
    %177 = vmatpush.xpose.msra.mxu0 0.0
    %178 = vmatpush.xpose.msra.mxu0 0.0
    %179 = vmatpush.xpose.msra.mxu0 0.0
    %180 = vmatpush.xpose.msra.mxu0 0.0
    %181 = vmatpush.xpose.msra.mxu0 0.0
    %182 = vmatpush.xpose.msra.mxu0 0.0
    %183 = vmatpush.xpose.msra.mxu0 0.0
    %184 = vmatpush.xpose.msra.mxu0 0.0
    %185 = vmatpush.xpose.msra.mxu0 0.0
    %186 = vmatpush.xpose.msra.mxu0 %v169
    %187 = vmatmul.f32.gmra.mxu0 %v166
    %v188 = vpop.f32.mrf.mxu0
    %v189 = vadd.f32 0.0, %v188
    %190 = vdwg.mxu0
    %vm191 = vcmask 64512
    %v192 = vsel %vm191, %v163, -inf
    %193 = vmax.xlane.f32.xlu0 %v192
    %v194 = vpop.xlane.xlu0 %193
    %v195 = vsel %vm191, %v189, -inf
    %196 = vmax.xlane.f32.xlu0 %v195
    %v197 = vpop.xlane.xlu0 %196
    %v198 = vsub.f32 %v163, %v194
    %v199 = vsub.f32 %v189, %v197
    %v200 = vmul.f32 %v198, 1.442695
    %v201 = vpow.pop %v200
    %v202 = vmul.f32 %v199, 1.442695
    %v203 = vpow.pop %v202
    %v204 = vsel %vm191, %v201, 0.0
    %205 = vadd.xlane.f32.xlu0 %v204
    %v206 = vpop.xlane.xlu0 %205
    %v207 = vsel %vm191, %v203, 0.0
    %208 = vadd.xlane.f32.xlu0 %v207
    %v209 = vpop.xlane.xlu0 %208
    %v210 = vrcp.pop %v206
    %v211 = vrcp.pop %v209
    %v212 = vmul.f32 %v201, %v210
    %v213 = vmul.f32 %v203, %v211
    %214 = vst.msk [vmem:[#allocation2] sm:$0xff] %vm191, %v212
    %215 = vst.msk [vmem:[#allocation2 + $0x8] sm:$0xff] %vm191, %v213
    %v217 = vsel %vm191, %v212, 0
    %219 = vmatpush.msra.mxu0 0.0
    %220 = vmatpush.msra.mxu0 0.0
    %221 = vmatpush.msra.mxu0 0.0
    %222 = vmatpush.msra.mxu0 0.0
    %223 = vmatpush.msra.mxu0 0.0
    %224 = vmatpush.msra.mxu0 0.0
    %225 = vmatpush.msra.mxu0 0.0
    %226 = vmatpush.msra.mxu0 0.0
    %227 = vmatpush.msra.mxu0 0.0
    %228 = vmatpush.msra.mxu0 0.0
    %229 = vmatpush.msra.mxu0 0.0
    %230 = vmatpush.msra.mxu0 0.0
    %231 = vmatpush.msra.mxu0 0.0
    %232 = vmatpush.msra.mxu0 0.0
    %233 = vmatpush.msra.mxu0 0.0
    %234 = vmatpush.msra.mxu0 %v133
    %235 = vmatmul.f32.gmra.mxu0 %v217
    %v236 = vpop.f32.mrf.mxu0
    %v237 = vadd.f32 0.0, %v236
    %238 = vdwg.mxu0
    %v240 = vsel %vm191, %v213, 0
    %242 = vmatpush.msra.mxu0 0.0
    %243 = vmatpush.msra.mxu0 0.0
    %244 = vmatpush.msra.mxu0 0.0
    %245 = vmatpush.msra.mxu0 0.0
    %246 = vmatpush.msra.mxu0 0.0
    %247 = vmatpush.msra.mxu0 0.0
    %248 = vmatpush.msra.mxu0 0.0
    %249 = vmatpush.msra.mxu0 0.0
    %250 = vmatpush.msra.mxu0 0.0
    %251 = vmatpush.msra.mxu0 0.0
    %252 = vmatpush.msra.mxu0 0.0
    %253 = vmatpush.msra.mxu0 0.0
    %254 = vmatpush.msra.mxu0 0.0
    %255 = vmatpush.msra.mxu0 0.0
    %256 = vmatpush.msra.mxu0 0.0
    %257 = vmatpush.msra.mxu0 %v136
    %258 = vmatmul.f32.gmra.mxu0 %v240
    %v259 = vpop.f32.mrf.mxu0
    %v260 = vadd.f32 0.0, %v259
    %261 = vdwg.mxu0
    %v262 = vld [vmem:[%s7] sm:$0xff]
    %v263 = vld [vmem:[%s7 + $0x8] sm:$0xff]
    %s264 = scalar_lea.vmem %s1, 32
    %v265 = vld [vmem:[%s264] sm:$0xff]
    %v266 = vld [vmem:[%s264 + $0x8] sm:$0xff]
    %v267 = vld [vmem:[%s264 + $0x10] sm:$0xff]
    %v268 = vld [vmem:[%s264 + $0x18] sm:$0xff]
    %s269 = scalar_lea.vmem %s4, 1
    %v270 = vld [vmem:[%s269] sm:$0x1]
    %v272 = vperm.slane %v270, 0
    %274 = vmatpush.msra.mxu0 0.0
    %275 = vmatpush.msra.mxu0 0.0
    %276 = vmatpush.msra.mxu0 0.0
    %277 = vmatpush.msra.mxu0 0.0
    %278 = vmatpush.msra.mxu0 0.0
    %279 = vmatpush.msra.mxu0 0.0
    %280 = vmatpush.msra.mxu0 0.0
    %281 = vmatpush.msra.mxu0 0.0
    %282 = vmatpush.msra.mxu0 0.0
    %283 = vmatpush.msra.mxu0 0.0
    %284 = vmatpush.msra.mxu0 0.0
    %285 = vmatpush.msra.mxu0 0.0
    %286 = vmatpush.msra.mxu0 %v268
    %287 = vmatpush.msra.mxu0 %v267
    %288 = vmatpush.msra.mxu0 %v266
    %289 = vmatpush.msra.mxu0 %v265
    %290 = vmatmul.f32.gmra.mxu0 %v48
    %v291 = vpop.f32.mrf.mxu0
    %v292 = vadd.f32 %v272, %v291
    %293 = vmatmul.f32.gmra.mxu0 %v51
    %v294 = vpop.f32.mrf.mxu0
    %v295 = vadd.f32 %v272, %v294
    %296 = vdwg.mxu0
    %s297 = scalar_lea.vmem %s2, 32
    %v298 = vld [vmem:[%s297] sm:$0xff]
    %v299 = vld [vmem:[%s297 + $0x8] sm:$0xff]
    %v300 = vld [vmem:[%s297 + $0x10] sm:$0xff]
    %v301 = vld [vmem:[%s297 + $0x18] sm:$0xff]
    %s302 = scalar_lea.vmem %s5, 1
    %v303 = vld [vmem:[%s302] sm:$0x1]
    %v305 = vperm.slane %v303, 0
    %307 = vmatpush.msra.mxu0 0.0
    %308 = vmatpush.msra.mxu0 0.0
    %309 = vmatpush.msra.mxu0 0.0
    %310 = vmatpush.msra.mxu0 0.0
    %311 = vmatpush.msra.mxu0 0.0
    %312 = vmatpush.msra.mxu0 0.0
    %313 = vmatpush.msra.mxu0 0.0
    %314 = vmatpush.msra.mxu0 0.0
    %315 = vmatpush.msra.mxu0 0.0
    %316 = vmatpush.msra.mxu0 0.0
    %317 = vmatpush.msra.mxu0 0.0
    %318 = vmatpush.msra.mxu0 0.0
    %319 = vmatpush.msra.mxu0 %v301
    %320 = vmatpush.msra.mxu0 %v300
    %321 = vmatpush.msra.mxu0 %v299
    %322 = vmatpush.msra.mxu0 %v298
    %323 = vmatmul.f32.gmra.mxu0 %v48
    %v324 = vpop.f32.mrf.mxu0
    %v325 = vadd.f32 %v305, %v324
    %326 = vmatmul.f32.gmra.mxu0 %v51
    %v327 = vpop.f32.mrf.mxu0
    %v328 = vadd.f32 %v305, %v327
    %329 = vdwg.mxu0
    %s330 = scalar_lea.vmem %s3, 32
    %v331 = vld [vmem:[%s330] sm:$0xff]
    %v332 = vld [vmem:[%s330 + $0x8] sm:$0xff]
    %v333 = vld [vmem:[%s330 + $0x10] sm:$0xff]
    %v334 = vld [vmem:[%s330 + $0x18] sm:$0xff]
    %s335 = scalar_lea.vmem %s6, 1
    %v336 = vld [vmem:[%s335] sm:$0x1]
    %v338 = vperm.slane %v336, 0
    %340 = vmatpush.msra.mxu0 0.0
    %341 = vmatpush.msra.mxu0 0.0
    %342 = vmatpush.msra.mxu0 0.0
    %343 = vmatpush.msra.mxu0 0.0
    %344 = vmatpush.msra.mxu0 0.0
    %345 = vmatpush.msra.mxu0 0.0
    %346 = vmatpush.msra.mxu0 0.0
    %347 = vmatpush.msra.mxu0 0.0
    %348 = vmatpush.msra.mxu0 0.0
    %349 = vmatpush.msra.mxu0 0.0
    %350 = vmatpush.msra.mxu0 0.0
    %351 = vmatpush.msra.mxu0 0.0
    %352 = vmatpush.msra.mxu0 %v334
    %353 = vmatpush.msra.mxu0 %v333
    %354 = vmatpush.msra.mxu0 %v332
    %355 = vmatpush.msra.mxu0 %v331
    %356 = vmatmul.f32.gmra.mxu0 %v48
    %v357 = vpop.f32.mrf.mxu0
    %v358 = vadd.f32 %v338, %v357
    %359 = vmatmul.f32.gmra.mxu0 %v51
    %v360 = vpop.f32.mrf.mxu0
    %v361 = vadd.f32 %v338, %v360
    %362 = vdwg.mxu0
    %v364 = vsel %vm138, %v292, 0
    %v367 = vsel %vm138, %v325, 0
    %369 = vmatpush.xpose.msra.mxu0 0.0
    %370 = vmatpush.xpose.msra.mxu0 0.0
    %371 = vmatpush.xpose.msra.mxu0 0.0
    %372 = vmatpush.xpose.msra.mxu0 0.0
    %373 = vmatpush.xpose.msra.mxu0 0.0
    %374 = vmatpush.xpose.msra.mxu0 0.0
    %375 = vmatpush.xpose.msra.mxu0 0.0
    %376 = vmatpush.xpose.msra.mxu0 0.0
    %377 = vmatpush.xpose.msra.mxu0 0.0
    %378 = vmatpush.xpose.msra.mxu0 0.0
    %379 = vmatpush.xpose.msra.mxu0 0.0
    %380 = vmatpush.xpose.msra.mxu0 0.0
    %381 = vmatpush.xpose.msra.mxu0 0.0
    %382 = vmatpush.xpose.msra.mxu0 0.0
    %383 = vmatpush.xpose.msra.mxu0 0.0
    %384 = vmatpush.xpose.msra.mxu0 %v367
    %385 = vmatmul.f32.gmra.mxu0 %v364
    %v386 = vpop.f32.mrf.mxu0
    %v387 = vadd.f32 0.0, %v386
    %388 = vdwg.mxu0
    %v390 = vsel %vm138, %v295, 0
    %v393 = vsel %vm138, %v328, 0
    %395 = vmatpush.xpose.msra.mxu0 0.0
    %396 = vmatpush.xpose.msra.mxu0 0.0
    %397 = vmatpush.xpose.msra.mxu0 0.0
    %398 = vmatpush.xpose.msra.mxu0 0.0
    %399 = vmatpush.xpose.msra.mxu0 0.0
    %400 = vmatpush.xpose.msra.mxu0 0.0
    %401 = vmatpush.xpose.msra.mxu0 0.0
    %402 = vmatpush.xpose.msra.mxu0 0.0
    %403 = vmatpush.xpose.msra.mxu0 0.0
    %404 = vmatpush.xpose.msra.mxu0 0.0
    %405 = vmatpush.xpose.msra.mxu0 0.0
    %406 = vmatpush.xpose.msra.mxu0 0.0
    %407 = vmatpush.xpose.msra.mxu0 0.0
    %408 = vmatpush.xpose.msra.mxu0 0.0
    %409 = vmatpush.xpose.msra.mxu0 0.0
    %410 = vmatpush.xpose.msra.mxu0 %v393
    %411 = vmatmul.f32.gmra.mxu0 %v390
    %v412 = vpop.f32.mrf.mxu0
    %v413 = vadd.f32 0.0, %v412
    %414 = vdwg.mxu0
    %v415 = vsel %vm191, %v387, -inf
    %416 = vmax.xlane.f32.xlu0 %v415
    %v417 = vpop.xlane.xlu0 %416
    %v418 = vsel %vm191, %v413, -inf
    %419 = vmax.xlane.f32.xlu0 %v418
    %v420 = vpop.xlane.xlu0 %419
    %v421 = vsub.f32 %v387, %v417
    %v422 = vsub.f32 %v413, %v420
    %v423 = vmul.f32 %v421, 1.442695
    %v424 = vpow.pop %v423
    %v425 = vmul.f32 %v422, 1.442695
    %v426 = vpow.pop %v425
    %v427 = vsel %vm191, %v424, 0.0
    %428 = vadd.xlane.f32.xlu0 %v427
    %v429 = vpop.xlane.xlu0 %428
    %v430 = vsel %vm191, %v426, 0.0
    %431 = vadd.xlane.f32.xlu0 %v430
    %v432 = vpop.xlane.xlu0 %431
    %v433 = vrcp.pop %v429
    %v434 = vrcp.pop %v432
    %v435 = vmul.f32 %v424, %v433
    %v436 = vmul.f32 %v426, %v434
    %s437 = scalar_lea.vmem [#allocation2], 16
    %438 = vst.msk [vmem:[%s437] sm:$0xff] %vm191, %v435
    %439 = vst.msk [vmem:[%s437 + $0x8] sm:$0xff] %vm191, %v436
    %v441 = vsel %vm191, %v435, 0
    %443 = vmatpush.msra.mxu0 0.0
    %444 = vmatpush.msra.mxu0 0.0
    %445 = vmatpush.msra.mxu0 0.0
    %446 = vmatpush.msra.mxu0 0.0
    %447 = vmatpush.msra.mxu0 0.0
    %448 = vmatpush.msra.mxu0 0.0
    %449 = vmatpush.msra.mxu0 0.0
    %450 = vmatpush.msra.mxu0 0.0
    %451 = vmatpush.msra.mxu0 0.0
    %452 = vmatpush.msra.mxu0 0.0
    %453 = vmatpush.msra.mxu0 0.0
    %454 = vmatpush.msra.mxu0 0.0
    %455 = vmatpush.msra.mxu0 0.0
    %456 = vmatpush.msra.mxu0 0.0
    %457 = vmatpush.msra.mxu0 0.0
    %458 = vmatpush.msra.mxu0 %v358
    %459 = vmatmul.f32.gmra.mxu0 %v441
    %v460 = vpop.f32.mrf.mxu0
    %v461 = vadd.f32 0.0, %v460
    %462 = vdwg.mxu0
    %v464 = vsel %vm191, %v436, 0
    %466 = vmatpush.msra.mxu0 0.0
    %467 = vmatpush.msra.mxu0 0.0
    %468 = vmatpush.msra.mxu0 0.0
    %469 = vmatpush.msra.mxu0 0.0
    %470 = vmatpush.msra.mxu0 0.0
    %471 = vmatpush.msra.mxu0 0.0
    %472 = vmatpush.msra.mxu0 0.0
    %473 = vmatpush.msra.mxu0 0.0
    %474 = vmatpush.msra.mxu0 0.0
    %475 = vmatpush.msra.mxu0 0.0
    %476 = vmatpush.msra.mxu0 0.0
    %477 = vmatpush.msra.mxu0 0.0
    %478 = vmatpush.msra.mxu0 0.0
    %479 = vmatpush.msra.mxu0 0.0
    %480 = vmatpush.msra.mxu0 0.0
    %481 = vmatpush.msra.mxu0 %v361
    %482 = vmatmul.f32.gmra.mxu0 %v464
    %v483 = vpop.f32.mrf.mxu0
    %v484 = vadd.f32 0.0, %v483
    %485 = vdwg.mxu0
    %s486 = scalar_lea.vmem %s7, 16
    %v487 = vld [vmem:[%s486] sm:$0xff]
    %v488 = vld [vmem:[%s486 + $0x8] sm:$0xff]
    %v490 = vsel %vm138, %v461, 0
    %v493 = vsel %vm138, %v484, 0
    %495 = vmatpush.msra.mxu0 0.0
    %496 = vmatpush.msra.mxu0 0.0
    %497 = vmatpush.msra.mxu0 0.0
    %498 = vmatpush.msra.mxu0 0.0
    %499 = vmatpush.msra.mxu0 0.0
    %500 = vmatpush.msra.mxu0 0.0
    %501 = vmatpush.msra.mxu0 0.0
    %502 = vmatpush.msra.mxu0 0.0
    %503 = vmatpush.msra.mxu0 0.0
    %504 = vmatpush.msra.mxu0 0.0
    %505 = vmatpush.msra.mxu0 0.0
    %506 = vmatpush.msra.mxu0 0.0
    %507 = vmatpush.msra.mxu0 0.0
    %508 = vmatpush.msra.mxu0 0.0
    %509 = vmatpush.msra.mxu0 %v488
    %510 = vmatpush.msra.mxu0 %v487
    %511 = vmatmul.f32.gmra.mxu0 %v490
    %v512 = vpop.f32.mrf.mxu0
    %v513 = vadd.f32 0.0, %v512
    %514 = vmatmul.f32.gmra.mxu0 %v493
    %v515 = vpop.f32.mrf.mxu0
    %v516 = vadd.f32 0.0, %v515
    %517 = vdwg.mxu0
    %v519 = vsel %vm138, %v237, 0
    %v522 = vsel %vm138, %v260, 0
    %524 = vmatpush.msra.mxu0 0.0
    %525 = vmatpush.msra.mxu0 0.0
    %526 = vmatpush.msra.mxu0 0.0
    %527 = vmatpush.msra.mxu0 0.0
    %528 = vmatpush.msra.mxu0 0.0
    %529 = vmatpush.msra.mxu0 0.0
    %530 = vmatpush.msra.mxu0 0.0
    %531 = vmatpush.msra.mxu0 0.0
    %532 = vmatpush.msra.mxu0 0.0
    %533 = vmatpush.msra.mxu0 0.0
    %534 = vmatpush.msra.mxu0 0.0
    %535 = vmatpush.msra.mxu0 0.0
    %536 = vmatpush.msra.mxu0 0.0
    %537 = vmatpush.msra.mxu0 0.0
    %538 = vmatpush.msra.mxu0 %v263
    %539 = vmatpush.msra.mxu0 %v262
    %540 = vmatmul.f32.gmra.mxu0 %v519
    %v541 = vpop.f32.mrf.mxu0
    %v542 = vadd.f32 %v513, %v541
    %543 = vmatmul.f32.gmra.mxu0 %v522
    %v544 = vpop.f32.mrf.mxu0
    %v545 = vadd.f32 %v516, %v544
    %546 = vdwg.mxu0
    %s547 = scalar_lea.vmem %s1, 64
    %v548 = vld [vmem:[%s547] sm:$0xff]
    %v549 = vld [vmem:[%s547 + $0x8] sm:$0xff]
    %v550 = vld [vmem:[%s547 + $0x10] sm:$0xff]
    %v551 = vld [vmem:[%s547 + $0x18] sm:$0xff]
    %s552 = scalar_lea.vmem %s4, 2
    %v553 = vld [vmem:[%s552] sm:$0x1]
    %v555 = vperm.slane %v553, 0
    %557 = vmatpush.msra.mxu0 0.0
    %558 = vmatpush.msra.mxu0 0.0
    %559 = vmatpush.msra.mxu0 0.0
    %560 = vmatpush.msra.mxu0 0.0
    %561 = vmatpush.msra.mxu0 0.0
    %562 = vmatpush.msra.mxu0 0.0
    %563 = vmatpush.msra.mxu0 0.0
    %564 = vmatpush.msra.mxu0 0.0
    %565 = vmatpush.msra.mxu0 0.0
    %566 = vmatpush.msra.mxu0 0.0
    %567 = vmatpush.msra.mxu0 0.0
    %568 = vmatpush.msra.mxu0 0.0
    %569 = vmatpush.msra.mxu0 %v551
    %570 = vmatpush.msra.mxu0 %v550
    %571 = vmatpush.msra.mxu0 %v549
    %572 = vmatpush.msra.mxu0 %v548
    %573 = vmatmul.f32.gmra.mxu0 %v48
    %v574 = vpop.f32.mrf.mxu0
    %v575 = vadd.f32 %v555, %v574
    %576 = vmatmul.f32.gmra.mxu0 %v51
    %v577 = vpop.f32.mrf.mxu0
    %v578 = vadd.f32 %v555, %v577
    %579 = vdwg.mxu0
    %s580 = scalar_lea.vmem %s2, 64
    %v581 = vld [vmem:[%s580] sm:$0xff]
    %v582 = vld [vmem:[%s580 + $0x8] sm:$0xff]
    %v583 = vld [vmem:[%s580 + $0x10] sm:$0xff]
    %v584 = vld [vmem:[%s580 + $0x18] sm:$0xff]
    %s585 = scalar_lea.vmem %s5, 2
    %v586 = vld [vmem:[%s585] sm:$0x1]
    %v588 = vperm.slane %v586, 0
    %590 = vmatpush.msra.mxu0 0.0
    %591 = vmatpush.msra.mxu0 0.0
    %592 = vmatpush.msra.mxu0 0.0
    %593 = vmatpush.msra.mxu0 0.0
    %594 = vmatpush.msra.mxu0 0.0
    %595 = vmatpush.msra.mxu0 0.0
    %596 = vmatpush.msra.mxu0 0.0
    %597 = vmatpush.msra.mxu0 0.0
    %598 = vmatpush.msra.mxu0 0.0
    %599 = vmatpush.msra.mxu0 0.0
    %600 = vmatpush.msra.mxu0 0.0
    %601 = vmatpush.msra.mxu0 0.0
    %602 = vmatpush.msra.mxu0 %v584
    %603 = vmatpush.msra.mxu0 %v583
    %604 = vmatpush.msra.mxu0 %v582
    %605 = vmatpush.msra.mxu0 %v581
    %606 = vmatmul.f32.gmra.mxu0 %v48
    %v607 = vpop.f32.mrf.mxu0
    %v608 = vadd.f32 %v588, %v607
    %609 = vmatmul.f32.gmra.mxu0 %v51
    %v610 = vpop.f32.mrf.mxu0
    %v611 = vadd.f32 %v588, %v610
    %612 = vdwg.mxu0
    %s613 = scalar_lea.vmem %s3, 64
    %v614 = vld [vmem:[%s613] sm:$0xff]
    %v615 = vld [vmem:[%s613 + $0x8] sm:$0xff]
    %v616 = vld [vmem:[%s613 + $0x10] sm:$0xff]
    %v617 = vld [vmem:[%s613 + $0x18] sm:$0xff]
    %s618 = scalar_lea.vmem %s6, 2
    %v619 = vld [vmem:[%s618] sm:$0x1]
    %v621 = vperm.slane %v619, 0
    %623 = vmatpush.msra.mxu0 0.0
    %624 = vmatpush.msra.mxu0 0.0
    %625 = vmatpush.msra.mxu0 0.0
    %626 = vmatpush.msra.mxu0 0.0
    %627 = vmatpush.msra.mxu0 0.0
    %628 = vmatpush.msra.mxu0 0.0
    %629 = vmatpush.msra.mxu0 0.0
    %630 = vmatpush.msra.mxu0 0.0
    %631 = vmatpush.msra.mxu0 0.0
    %632 = vmatpush.msra.mxu0 0.0
    %633 = vmatpush.msra.mxu0 0.0
    %634 = vmatpush.msra.mxu0 0.0
    %635 = vmatpush.msra.mxu0 %v617
    %636 = vmatpush.msra.mxu0 %v616
    %637 = vmatpush.msra.mxu0 %v615
    %638 = vmatpush.msra.mxu0 %v614
    %639 = vmatmul.f32.gmra.mxu0 %v48
    %v640 = vpop.f32.mrf.mxu0
    %v641 = vadd.f32 %v621, %v640
    %642 = vmatmul.f32.gmra.mxu0 %v51
    %v643 = vpop.f32.mrf.mxu0
    %v644 = vadd.f32 %v621, %v643
    %645 = vdwg.mxu0
    %v647 = vsel %vm138, %v575, 0
    %v650 = vsel %vm138, %v608, 0
    %652 = vmatpush.xpose.msra.mxu0 0.0
    %653 = vmatpush.xpose.msra.mxu0 0.0
    %654 = vmatpush.xpose.msra.mxu0 0.0
    %655 = vmatpush.xpose.msra.mxu0 0.0
    %656 = vmatpush.xpose.msra.mxu0 0.0
    %657 = vmatpush.xpose.msra.mxu0 0.0
    %658 = vmatpush.xpose.msra.mxu0 0.0
    %659 = vmatpush.xpose.msra.mxu0 0.0
    %660 = vmatpush.xpose.msra.mxu0 0.0
    %661 = vmatpush.xpose.msra.mxu0 0.0
    %662 = vmatpush.xpose.msra.mxu0 0.0
    %663 = vmatpush.xpose.msra.mxu0 0.0
    %664 = vmatpush.xpose.msra.mxu0 0.0
    %665 = vmatpush.xpose.msra.mxu0 0.0
    %666 = vmatpush.xpose.msra.mxu0 0.0
    %667 = vmatpush.xpose.msra.mxu0 %v650
    %668 = vmatmul.f32.gmra.mxu0 %v647
    %v669 = vpop.f32.mrf.mxu0
    %v670 = vadd.f32 0.0, %v669
    %671 = vdwg.mxu0
    %v673 = vsel %vm138, %v578, 0
    %v676 = vsel %vm138, %v611, 0
    %678 = vmatpush.xpose.msra.mxu0 0.0
    %679 = vmatpush.xpose.msra.mxu0 0.0
    %680 = vmatpush.xpose.msra.mxu0 0.0
    %681 = vmatpush.xpose.msra.mxu0 0.0
    %682 = vmatpush.xpose.msra.mxu0 0.0
    %683 = vmatpush.xpose.msra.mxu0 0.0
    %684 = vmatpush.xpose.msra.mxu0 0.0
    %685 = vmatpush.xpose.msra.mxu0 0.0
    %686 = vmatpush.xpose.msra.mxu0 0.0
    %687 = vmatpush.xpose.msra.mxu0 0.0
    %688 = vmatpush.xpose.msra.mxu0 0.0
    %689 = vmatpush.xpose.msra.mxu0 0.0
    %690 = vmatpush.xpose.msra.mxu0 0.0
    %691 = vmatpush.xpose.msra.mxu0 0.0
    %692 = vmatpush.xpose.msra.mxu0 0.0
    %693 = vmatpush.xpose.msra.mxu0 %v676
    %694 = vmatmul.f32.gmra.mxu0 %v673
    %v695 = vpop.f32.mrf.mxu0
    %v696 = vadd.f32 0.0, %v695
    %697 = vdwg.mxu0
    %v698 = vsel %vm191, %v670, -inf
    %699 = vmax.xlane.f32.xlu0 %v698
    %v700 = vpop.xlane.xlu0 %699
    %v701 = vsel %vm191, %v696, -inf
    %702 = vmax.xlane.f32.xlu0 %v701
    %v703 = vpop.xlane.xlu0 %702
    %v704 = vsub.f32 %v670, %v700
    %v705 = vsub.f32 %v696, %v703
    %v706 = vmul.f32 %v704, 1.442695
    %v707 = vpow.pop %v706
    %v708 = vmul.f32 %v705, 1.442695
    %v709 = vpow.pop %v708
    %v710 = vsel %vm191, %v707, 0.0
    %711 = vadd.xlane.f32.xlu0 %v710
    %v712 = vpop.xlane.xlu0 %711
    %v713 = vsel %vm191, %v709, 0.0
    %714 = vadd.xlane.f32.xlu0 %v713
    %v715 = vpop.xlane.xlu0 %714
    %v716 = vrcp.pop %v712
    %v717 = vrcp.pop %v715
    %v718 = vmul.f32 %v707, %v716
    %v719 = vmul.f32 %v709, %v717
    %s720 = scalar_lea.vmem [#allocation2], 32
    %721 = vst.msk [vmem:[%s720] sm:$0xff] %vm191, %v718
    %722 = vst.msk [vmem:[%s720 + $0x8] sm:$0xff] %vm191, %v719
    %v724 = vsel %vm191, %v718, 0
    %726 = vmatpush.msra.mxu0 0.0
    %727 = vmatpush.msra.mxu0 0.0
    %728 = vmatpush.msra.mxu0 0.0
    %729 = vmatpush.msra.mxu0 0.0
    %730 = vmatpush.msra.mxu0 0.0
    %731 = vmatpush.msra.mxu0 0.0
    %732 = vmatpush.msra.mxu0 0.0
    %733 = vmatpush.msra.mxu0 0.0
    %734 = vmatpush.msra.mxu0 0.0
    %735 = vmatpush.msra.mxu0 0.0
    %736 = vmatpush.msra.mxu0 0.0
    %737 = vmatpush.msra.mxu0 0.0
    %738 = vmatpush.msra.mxu0 0.0
    %739 = vmatpush.msra.mxu0 0.0
    %740 = vmatpush.msra.mxu0 0.0
    %741 = vmatpush.msra.mxu0 %v641
    %742 = vmatmul.f32.gmra.mxu0 %v724
    %v743 = vpop.f32.mrf.mxu0
    %v744 = vadd.f32 0.0, %v743
    %745 = vdwg.mxu0
    %v747 = vsel %vm191, %v719, 0
    %749 = vmatpush.msra.mxu0 0.0
    %750 = vmatpush.msra.mxu0 0.0
    %751 = vmatpush.msra.mxu0 0.0
    %752 = vmatpush.msra.mxu0 0.0
    %753 = vmatpush.msra.mxu0 0.0
    %754 = vmatpush.msra.mxu0 0.0
    %755 = vmatpush.msra.mxu0 0.0
    %756 = vmatpush.msra.mxu0 0.0
    %757 = vmatpush.msra.mxu0 0.0
    %758 = vmatpush.msra.mxu0 0.0
    %759 = vmatpush.msra.mxu0 0.0
    %760 = vmatpush.msra.mxu0 0.0
    %761 = vmatpush.msra.mxu0 0.0
    %762 = vmatpush.msra.mxu0 0.0
    %763 = vmatpush.msra.mxu0 0.0
    %764 = vmatpush.msra.mxu0 %v644
    %765 = vmatmul.f32.gmra.mxu0 %v747
    %v766 = vpop.f32.mrf.mxu0
    %v767 = vadd.f32 0.0, %v766
    %768 = vdwg.mxu0
    %s769 = scalar_lea.vmem %s7, 32
    %v770 = vld [vmem:[%s769] sm:$0xff]
    %v771 = vld [vmem:[%s769 + $0x8] sm:$0xff]
    %v773 = vsel %vm138, %v744, 0
    %v776 = vsel %vm138, %v767, 0
    %778 = vmatpush.msra.mxu0 0.0
    %779 = vmatpush.msra.mxu0 0.0
    %780 = vmatpush.msra.mxu0 0.0
    %781 = vmatpush.msra.mxu0 0.0
    %782 = vmatpush.msra.mxu0 0.0
    %783 = vmatpush.msra.mxu0 0.0
    %784 = vmatpush.msra.mxu0 0.0
    %785 = vmatpush.msra.mxu0 0.0
    %786 = vmatpush.msra.mxu0 0.0
    %787 = vmatpush.msra.mxu0 0.0
    %788 = vmatpush.msra.mxu0 0.0
    %789 = vmatpush.msra.mxu0 0.0
    %790 = vmatpush.msra.mxu0 0.0
    %791 = vmatpush.msra.mxu0 0.0
    %792 = vmatpush.msra.mxu0 %v771
    %793 = vmatpush.msra.mxu0 %v770
    %794 = vmatmul.f32.gmra.mxu0 %v773
    %v795 = vpop.f32.mrf.mxu0
    %v796 = vadd.f32 0.0, %v795
    %797 = vmatmul.f32.gmra.mxu0 %v776
    %v798 = vpop.f32.mrf.mxu0
    %v799 = vadd.f32 0.0, %v798
    %800 = vdwg.mxu0
    %v801 = vadd.f32 %v542, %v796
    %v802 = vadd.f32 %v545, %v799
    %s803 = scalar_lea.vmem %s1, 96
    %v804 = vld [vmem:[%s803] sm:$0xff]
    %v805 = vld [vmem:[%s803 + $0x8] sm:$0xff]
    %v806 = vld [vmem:[%s803 + $0x10] sm:$0xff]
    %v807 = vld [vmem:[%s803 + $0x18] sm:$0xff]
    %s808 = scalar_lea.vmem %s4, 3
    %v809 = vld [vmem:[%s808] sm:$0x1]
    %v811 = vperm.slane %v809, 0
    %813 = vmatpush.msra.mxu0 0.0
    %814 = vmatpush.msra.mxu0 0.0
    %815 = vmatpush.msra.mxu0 0.0
    %816 = vmatpush.msra.mxu0 0.0
    %817 = vmatpush.msra.mxu0 0.0
    %818 = vmatpush.msra.mxu0 0.0
    %819 = vmatpush.msra.mxu0 0.0
    %820 = vmatpush.msra.mxu0 0.0
    %821 = vmatpush.msra.mxu0 0.0
    %822 = vmatpush.msra.mxu0 0.0
    %823 = vmatpush.msra.mxu0 0.0
    %824 = vmatpush.msra.mxu0 0.0
    %825 = vmatpush.msra.mxu0 %v807
    %826 = vmatpush.msra.mxu0 %v806
    %827 = vmatpush.msra.mxu0 %v805
    %828 = vmatpush.msra.mxu0 %v804
    %829 = vmatmul.f32.gmra.mxu0 %v48
    %v830 = vpop.f32.mrf.mxu0
    %v831 = vadd.f32 %v811, %v830
    %832 = vmatmul.f32.gmra.mxu0 %v51
    %v833 = vpop.f32.mrf.mxu0
    %v834 = vadd.f32 %v811, %v833
    %835 = vdwg.mxu0
    %s836 = scalar_lea.vmem %s2, 96
    %v837 = vld [vmem:[%s836] sm:$0xff]
    %v838 = vld [vmem:[%s836 + $0x8] sm:$0xff]
    %v839 = vld [vmem:[%s836 + $0x10] sm:$0xff]
    %v840 = vld [vmem:[%s836 + $0x18] sm:$0xff]
    %s841 = scalar_lea.vmem %s5, 3
    %v842 = vld [vmem:[%s841] sm:$0x1]
    %v844 = vperm.slane %v842, 0
    %846 = vmatpush.msra.mxu0 0.0
    %847 = vmatpush.msra.mxu0 0.0
    %848 = vmatpush.msra.mxu0 0.0
    %849 = vmatpush.msra.mxu0 0.0
    %850 = vmatpush.msra.mxu0 0.0
    %851 = vmatpush.msra.mxu0 0.0
    %852 = vmatpush.msra.mxu0 0.0
    %853 = vmatpush.msra.mxu0 0.0
    %854 = vmatpush.msra.mxu0 0.0
    %855 = vmatpush.msra.mxu0 0.0
    %856 = vmatpush.msra.mxu0 0.0
    %857 = vmatpush.msra.mxu0 0.0
    %858 = vmatpush.msra.mxu0 %v840
    %859 = vmatpush.msra.mxu0 %v839
    %860 = vmatpush.msra.mxu0 %v838
    %861 = vmatpush.msra.mxu0 %v837
    %862 = vmatmul.f32.gmra.mxu0 %v48
    %v863 = vpop.f32.mrf.mxu0
    %v864 = vadd.f32 %v844, %v863
    %865 = vmatmul.f32.gmra.mxu0 %v51
    %v866 = vpop.f32.mrf.mxu0
    %v867 = vadd.f32 %v844, %v866
    %868 = vdwg.mxu0
    %s869 = scalar_lea.vmem %s3, 96
    %v870 = vld [vmem:[%s869] sm:$0xff]
    %v871 = vld [vmem:[%s869 + $0x8] sm:$0xff]
    %v872 = vld [vmem:[%s869 + $0x10] sm:$0xff]
    %v873 = vld [vmem:[%s869 + $0x18] sm:$0xff]
    %s874 = scalar_lea.vmem %s6, 3
    %v875 = vld [vmem:[%s874] sm:$0x1]
    %v877 = vperm.slane %v875, 0
    %879 = vmatpush.msra.mxu0 0.0
    %880 = vmatpush.msra.mxu0 0.0
    %881 = vmatpush.msra.mxu0 0.0
    %882 = vmatpush.msra.mxu0 0.0
    %883 = vmatpush.msra.mxu0 0.0
    %884 = vmatpush.msra.mxu0 0.0
    %885 = vmatpush.msra.mxu0 0.0
    %886 = vmatpush.msra.mxu0 0.0
    %887 = vmatpush.msra.mxu0 0.0
    %888 = vmatpush.msra.mxu0 0.0
    %889 = vmatpush.msra.mxu0 0.0
    %890 = vmatpush.msra.mxu0 0.0
    %891 = vmatpush.msra.mxu0 %v873
    %892 = vmatpush.msra.mxu0 %v872
    %893 = vmatpush.msra.mxu0 %v871
    %894 = vmatpush.msra.mxu0 %v870
    %895 = vmatmul.f32.gmra.mxu0 %v48
    %v896 = vpop.f32.mrf.mxu0
    %v897 = vadd.f32 %v877, %v896
    %898 = vmatmul.f32.gmra.mxu0 %v51
    %v899 = vpop.f32.mrf.mxu0
    %v900 = vadd.f32 %v877, %v899
    %901 = vdwg.mxu0
    %v903 = vsel %vm138, %v831, 0
    %v906 = vsel %vm138, %v864, 0
    %908 = vmatpush.xpose.msra.mxu0 0.0
    %909 = vmatpush.xpose.msra.mxu0 0.0
    %910 = vmatpush.xpose.msra.mxu0 0.0
    %911 = vmatpush.xpose.msra.mxu0 0.0
    %912 = vmatpush.xpose.msra.mxu0 0.0
    %913 = vmatpush.xpose.msra.mxu0 0.0
    %914 = vmatpush.xpose.msra.mxu0 0.0
    %915 = vmatpush.xpose.msra.mxu0 0.0
    %916 = vmatpush.xpose.msra.mxu0 0.0
    %917 = vmatpush.xpose.msra.mxu0 0.0
    %918 = vmatpush.xpose.msra.mxu0 0.0
    %919 = vmatpush.xpose.msra.mxu0 0.0
    %920 = vmatpush.xpose.msra.mxu0 0.0
    %921 = vmatpush.xpose.msra.mxu0 0.0
    %922 = vmatpush.xpose.msra.mxu0 0.0
    %923 = vmatpush.xpose.msra.mxu0 %v906
    %924 = vmatmul.f32.gmra.mxu0 %v903
    %v925 = vpop.f32.mrf.mxu0
    %v926 = vadd.f32 0.0, %v925
    %927 = vdwg.mxu0
    %v929 = vsel %vm138, %v834, 0
    %v932 = vsel %vm138, %v867, 0
    %934 = vmatpush.xpose.msra.mxu0 0.0
    %935 = vmatpush.xpose.msra.mxu0 0.0
    %936 = vmatpush.xpose.msra.mxu0 0.0
    %937 = vmatpush.xpose.msra.mxu0 0.0
    %938 = vmatpush.xpose.msra.mxu0 0.0
    %939 = vmatpush.xpose.msra.mxu0 0.0
    %940 = vmatpush.xpose.msra.mxu0 0.0
    %941 = vmatpush.xpose.msra.mxu0 0.0
    %942 = vmatpush.xpose.msra.mxu0 0.0
    %943 = vmatpush.xpose.msra.mxu0 0.0
    %944 = vmatpush.xpose.msra.mxu0 0.0
    %945 = vmatpush.xpose.msra.mxu0 0.0
    %946 = vmatpush.xpose.msra.mxu0 0.0
    %947 = vmatpush.xpose.msra.mxu0 0.0
    %948 = vmatpush.xpose.msra.mxu0 0.0
    %949 = vmatpush.xpose.msra.mxu0 %v932
    %950 = vmatmul.f32.gmra.mxu0 %v929
    %v951 = vpop.f32.mrf.mxu0
    %v952 = vadd.f32 0.0, %v951
    %953 = vdwg.mxu0
    %v954 = vsel %vm191, %v926, -inf
    %955 = vmax.xlane.f32.xlu0 %v954
    %v956 = vpop.xlane.xlu0 %955
    %v957 = vsel %vm191, %v952, -inf
    %958 = vmax.xlane.f32.xlu0 %v957
    %v959 = vpop.xlane.xlu0 %958
    %v960 = vsub.f32 %v926, %v956
    %v961 = vsub.f32 %v952, %v959
    %v962 = vmul.f32 %v960, 1.442695
    %v963 = vpow.pop %v962
    %v964 = vmul.f32 %v961, 1.442695
    %v965 = vpow.pop %v964
    %v966 = vsel %vm191, %v963, 0.0
    %967 = vadd.xlane.f32.xlu0 %v966
    %v968 = vpop.xlane.xlu0 %967
    %v969 = vsel %vm191, %v965, 0.0
    %970 = vadd.xlane.f32.xlu0 %v969
    %v971 = vpop.xlane.xlu0 %970
    %v972 = vrcp.pop %v968
    %v973 = vrcp.pop %v971
    %v974 = vmul.f32 %v963, %v972
    %v975 = vmul.f32 %v965, %v973
    %s976 = scalar_lea.vmem [#allocation2], 48
    %977 = vst.msk [vmem:[%s976] sm:$0xff] %vm191, %v974
    %978 = vst.msk [vmem:[%s976 + $0x8] sm:$0xff] %vm191, %v975
    %v980 = vsel %vm191, %v974, 0
    %982 = vmatpush.msra.mxu0 0.0
    %983 = vmatpush.msra.mxu0 0.0
    %984 = vmatpush.msra.mxu0 0.0
    %985 = vmatpush.msra.mxu0 0.0
    %986 = vmatpush.msra.mxu0 0.0
    %987 = vmatpush.msra.mxu0 0.0
    %988 = vmatpush.msra.mxu0 0.0
    %989 = vmatpush.msra.mxu0 0.0
    %990 = vmatpush.msra.mxu0 0.0
    %991 = vmatpush.msra.mxu0 0.0
    %992 = vmatpush.msra.mxu0 0.0
    %993 = vmatpush.msra.mxu0 0.0
    %994 = vmatpush.msra.mxu0 0.0
    %995 = vmatpush.msra.mxu0 0.0
    %996 = vmatpush.msra.mxu0 0.0
    %997 = vmatpush.msra.mxu0 %v897
    %998 = vmatmul.f32.gmra.mxu0 %v980
    %v999 = vpop.f32.mrf.mxu0
    %v1000 = vadd.f32 0.0, %v999
    %1001 = vdwg.mxu0
    %v1003 = vsel %vm191, %v975, 0
    %1005 = vmatpush.msra.mxu0 0.0
    %1006 = vmatpush.msra.mxu0 0.0
    %1007 = vmatpush.msra.mxu0 0.0
    %1008 = vmatpush.msra.mxu0 0.0
    %1009 = vmatpush.msra.mxu0 0.0
    %1010 = vmatpush.msra.mxu0 0.0
    %1011 = vmatpush.msra.mxu0 0.0
    %1012 = vmatpush.msra.mxu0 0.0
    %1013 = vmatpush.msra.mxu0 0.0
    %1014 = vmatpush.msra.mxu0 0.0
    %1015 = vmatpush.msra.mxu0 0.0
    %1016 = vmatpush.msra.mxu0 0.0
    %1017 = vmatpush.msra.mxu0 0.0
    %1018 = vmatpush.msra.mxu0 0.0
    %1019 = vmatpush.msra.mxu0 0.0
    %1020 = vmatpush.msra.mxu0 %v900
    %1021 = vmatmul.f32.gmra.mxu0 %v1003
    %v1022 = vpop.f32.mrf.mxu0
    %v1023 = vadd.f32 0.0, %v1022
    %1024 = vdwg.mxu0
    %s1025 = scalar_lea.vmem %s7, 48
    %v1026 = vld [vmem:[%s1025] sm:$0xff]
    %v1027 = vld [vmem:[%s1025 + $0x8] sm:$0xff]
    %v1029 = vsel %vm138, %v1000, 0
    %v1032 = vsel %vm138, %v1023, 0
    %1034 = vmatpush.msra.mxu0 0.0
    %1035 = vmatpush.msra.mxu0 0.0
    %1036 = vmatpush.msra.mxu0 0.0
    %1037 = vmatpush.msra.mxu0 0.0
    %1038 = vmatpush.msra.mxu0 0.0
    %1039 = vmatpush.msra.mxu0 0.0
    %1040 = vmatpush.msra.mxu0 0.0
    %1041 = vmatpush.msra.mxu0 0.0
    %1042 = vmatpush.msra.mxu0 0.0
    %1043 = vmatpush.msra.mxu0 0.0
    %1044 = vmatpush.msra.mxu0 0.0
    %1045 = vmatpush.msra.mxu0 0.0
    %1046 = vmatpush.msra.mxu0 0.0
    %1047 = vmatpush.msra.mxu0 0.0
    %1048 = vmatpush.msra.mxu0 %v1027
    %1049 = vmatpush.msra.mxu0 %v1026
    %1050 = vmatmul.f32.gmra.mxu0 %v1029
    %v1051 = vpop.f32.mrf.mxu0
    %v1052 = vadd.f32 0.0, %v1051
    %1053 = vmatmul.f32.gmra.mxu0 %v1032
    %v1054 = vpop.f32.mrf.mxu0
    %v1055 = vadd.f32 0.0, %v1054
    %1056 = vdwg.mxu0
    %v1057 = vadd.f32 %v801, %v1052
    %v1058 = vadd.f32 %v802, %v1055
    %v1059 = vld [vmem:[%s8] sm:$0x1]
    %v1061 = vperm.slane %v1059, 0
    %v1063 = vadd.f32 %v1057, %v1061
    %v1064 = vadd.f32 %v1058, %v1061
    %1065 = vst.msk [vmem:[#allocation4] sm:$0xff] %vm46, %v1063
    %1066 = vst.msk [vmem:[#allocation4 + $0x8] sm:$0xff] %vm46, %v1064
    // Predicated region
    $region38: #{tpu_custom_call.1} parent=1 // pred_check
      _
    $region39: #{tpu_custom_call.1} parent=1 // pred_check_branch
      %1068 = sbr.rel (0) target = $region41
    $region40: #{tpu_custom_call.1} parent=1 // pred_region
      %1070 = vsyncadd [#allocation3], 0
      %s1071 = sshll.u32 [#allocation2], 4
      %s1072 = int_to_ptr.vmem [resolvable:$true] %s1071
      %s1073 = sshll.u32 %s9, 4
      %s1074 = int_to_ptr.hbm [resolvable:$true] %s1073
      %1079 = dma.vmem_to_hbm [thread:$0]  %s1072, 1024, %s1074, [#allocation3], 128, 128, 8
    $region41: #{tpu_custom_call.1} parent=1 // pred_fallthru
      _
    // Predicated region
    $region42: #{tpu_custom_call.1} parent=1 // pred_check
      _
    $region43: #{tpu_custom_call.1} parent=1 // pred_check_branch
      %1081 = sbr.rel (0) target = $region45
    $region44: #{tpu_custom_call.1} parent=1 // pred_region
      %1083 = vsyncadd [#allocation5], 0
      %s1084 = sshll.u32 [#allocation4], 4
      %s1085 = int_to_ptr.vmem [resolvable:$true] %s1084
      %s1086 = sshll.u32 %s10, 4
      %s1087 = int_to_ptr.hbm [resolvable:$true] %s1086
      %1092 = dma.vmem_to_hbm [thread:$0]  %s1085, 256, %s1087, [#allocation5], 128, 128, 8
    $region45: #{tpu_custom_call.1} parent=1 // pred_fallthru
      _
    // Predicated region
    $region46: #{tpu_custom_call.1} parent=1 // pred_check
      _
    $region47: #{tpu_custom_call.1} parent=1 // pred_check_branch
      %1094 = sbr.rel (0) target = $region49
    $region48: #{tpu_custom_call.1} parent=1 // pred_region
      %1096 = dma.done [#allocation3], 1024
    $region49: #{tpu_custom_call.1} parent=1 // pred_fallthru
      _
    // Predicated region
    $region50: #{tpu_custom_call.1} parent=1 // pred_check
      _
    $region51: #{tpu_custom_call.1} parent=1 // pred_check_branch
      %1098 = sbr.rel (0) target = $region53
    $region52: #{tpu_custom_call.1} parent=1 // pred_region
      %1100 = dma.done [#allocation5], 256
    $region53: #{tpu_custom_call.1} parent=1 // pred_fallthru
      _
    %1101 = vsyncpa [#allocation3], 1
    %1102 = vsyncpa [#allocation5], 1

</llo_original>
